<compile_context>
chip_gen: v7x
topology: tpu7x:2x2x1
jax: 0.10.0
libtpu: 0.0.40
codegen_flags: <defaults>
</compile_context>

<pallas_src>
import functools

import jax
import jax.numpy as jnp
import numpy as np
from jax.experimental import pallas as pl
from jax.experimental.pallas import tpu as pltpu

LANE = 128   # lane width
_SUB = 16    # sublane granularity (bf16 output tiles)


def _round_up(x, m):
    return ((x + m - 1) // m) * m


# ----------------------------- Pallas kernel --------------------------------
def _mm_cate_head_kernel(
    f_ref, e_ref, c_ref,        # activations (Bt,Dv),(Bt,Dt),(Bt,Dc)  f32
    wvis_ref,                   # (Dv, 2P)  [proj_visual*BN | layer_attn_visual] bf16
    wtxt_ref,                   # (Dt, 2P)  [proj_text*BN   | layer_attn_text]   bf16
    wcate_ref,                  # (Dc, P)   proj_cate*BN                         bf16
    wa_ref,                     # (3P, 3P)  fc_as_self_attn*BN (rows re-blocked) bf16
    wcls_ref,                   # (3P, Cp)  classifier                           bf16
    bias_ref,                   # (1, 5P+3P+Cp) packed f32 biases
    out_ref,                    # (Bt, Cp)  bf16
    *, pp, jp, cp,
):
    # bf16 cast in-kernel (no separate XLA pad/cast pass over HBM)
    f = f_ref[...].astype(jnp.bfloat16)
    e = e_ref[...].astype(jnp.bfloat16)
    c = c_ref[...].astype(jnp.bfloat16)

    b_vis = bias_ref[:, 0:2 * pp]
    b_txt = bias_ref[:, 2 * pp:4 * pp]
    b_cate = bias_ref[:, 4 * pp:5 * pp]
    b_attn = bias_ref[:, 5 * pp:5 * pp + jp]
    b_cls = bias_ref[:, 5 * pp + jp:5 * pp + jp + cp]

    # visual branch: one N=2P matmul -> [BN(proj_visual(f)) | layer_attn_visual(f)]
    vis = jnp.dot(f, wvis_ref[...], preferred_element_type=jnp.float32) + b_vis
    f_tilde = jnp.maximum(vis[:, :pp], 0.0)          # relu(BN(proj_visual(f_i)))
    alpha_e = jax.nn.sigmoid(vis[:, pp:])            # sigmoid(layer_attn_visual(f_i))

    # text branch: one N=2P matmul -> [BN(proj_text(e)) | layer_attn_text(e)]
    txt = jnp.dot(e, wtxt_ref[...], preferred_element_type=jnp.float32) + b_txt
    e_tilde = jnp.maximum(txt[:, :pp], 0.0)          # relu(BN(proj_text(e_i)))
    alpha_v = jax.nn.sigmoid(txt[:, pp:])            # sigmoid(layer_attn_text(e_i))

    # categorical branch
    cate_r = jnp.maximum(
        jnp.dot(c, wcate_ref[...], preferred_element_type=jnp.float32) + b_cate, 0.0)

    masked_v = alpha_v * f_tilde                     # multiply(alpha_v_i, f_i_tilde)
    masked_e = alpha_e * e_tilde                     # multiply(alpha_e_i, e_i_tilde)

    # joint_repr = concat(masked_v, masked_e, cate_repr): all pieces are 128-lane
    # aligned, so the concat stays in vregs; one K=3P, N=3P matmul against the
    # BN-folded fc_as_self_attn weight.
    joint = jnp.concatenate([masked_v, masked_e, cate_r], axis=1).astype(jnp.bfloat16)
    mid = jnp.dot(joint, wa_ref[...], preferred_element_type=jnp.float32) + b_attn

    # logits = cls_layer(dropout(relu(mid)))  (dropout == identity in eval mode)
    relu_mid = jnp.maximum(mid, 0.0).astype(jnp.bfloat16)
    out_ref[...] = (jnp.dot(relu_mid, wcls_ref[...], preferred_element_type=jnp.float32)
                    + b_cls).astype(out_ref.dtype)


# ----------------------------- wrapper ---------------------------------------
def _choose_b_tile(B):
    if B >= 1024:
        return 512                                   # amortize per-step overhead
    if B >= 128:
        # exactly two batch tiles -> grid=(2,): both TensorCores engage on v7x
        return _round_up(B, 2 * _SUB) // 2
    return _round_up(max(B, 1), _SUB)                # tiny B: single (weight-DMA bound) step


@functools.partial(jax.jit, static_argnames=("num_class",))
def mm_cate_head(f_i, e_i, c_i, kparams, num_class):
    wvis, wtxt, wcate, wa, wcls, biases = kparams

    B = f_i.shape[0]
    Dv, Dt, Dc = f_i.shape[1], e_i.shape[1], c_i.shape[1]
    Pp = wvis.shape[1] // 2
    Jp = wa.shape[1]
    Cp = wcls.shape[1]

    b_tile = _choose_b_tile(B)
    pB = _round_up(B, b_tile)
    grid = (pB // b_tile,)

    def pad_batch(x):
        if pB == x.shape[0]:
            return x
        return jnp.pad(x, ((0, pB - x.shape[0]), (0, 0)))

    # activations stay f32 with true feature dims; bf16 cast happens in-kernel
    f_p, e_p, c_p = pad_batch(f_i), pad_batch(e_i), pad_batch(c_i)

    def act_spec(d):
        return pl.BlockSpec((b_tile, d), lambda i: (i, 0))

    def full_spec(a):
        # weights / packed biases: single VMEM-resident block, reused every batch tile
        return pl.BlockSpec(a.shape, lambda i: (0,) * a.ndim)

    weights = (wvis, wtxt, wcate, wa, wcls, biases)

    flops = 2 * pB * (Dv * 2 * Pp + Dt * 2 * Pp + Dc * Pp + Jp * Jp + Jp * Cp)
    bytes_accessed = (pB * (Dv + Dt + Dc) * 4                      # f32 activations in
                      + 2 * sum(int(w.size) for w in weights[:-1])  # bf16 weights
                      + 4 * int(biases.size)                        # f32 biases
                      + pB * Cp * 2)                                # bf16 logits out
    cost = pl.CostEstimate(flops=int(flops),
                           transcendentals=int(pB * 2 * Pp),        # sigmoids
                           bytes_accessed=int(bytes_accessed))

    out = pl.pallas_call(
        functools.partial(_mm_cate_head_kernel, pp=Pp, jp=Jp, cp=Cp),
        out_shape=jax.ShapeDtypeStruct((pB, Cp), jnp.bfloat16),
        grid=grid,
        in_specs=[act_spec(Dv), act_spec(Dt), act_spec(Dc)]
                 + [full_spec(w) for w in weights],
        out_specs=pl.BlockSpec((b_tile, Cp), lambda i: (i, 0)),
        compiler_params=pltpu.CompilerParams(
            dimension_semantics=("parallel",),
            vmem_limit_bytes=32 << 20,
        ),
        cost_estimate=cost,
    )(f_p, e_p, c_p, *weights)

    return out[:B, :num_class].astype(jnp.float32)


# ----------------------------- parameter setup -------------------------------
def _linear_params(key, fan_in, fan_out):
    # PyTorch nn.Linear default init: U(-1/sqrt(fan_in), 1/sqrt(fan_in))
    kw, kb = jax.random.split(key)
    bound = 1.0 / np.sqrt(fan_in)
    w = jax.random.uniform(kw, (fan_in, fan_out), jnp.float32, -bound, bound)
    b = jax.random.uniform(kb, (fan_out,), jnp.float32, -bound, bound)
    return w, b


def _bn_fold(key, dim, eps=1e-5):
    # BatchNorm1d inference: y = (x - mean)/sqrt(var+eps)*gamma + beta -> x*scale + shift
    kg, kb, km, kv = jax.random.split(key, 4)
    gamma = 1.0 + 0.1 * jax.random.normal(kg, (dim,), jnp.float32)
    beta = 0.1 * jax.random.normal(kb, (dim,), jnp.float32)
    mean = 0.1 * jax.random.normal(km, (dim,), jnp.float32)
    var = jnp.abs(1.0 + 0.1 * jax.random.normal(kv, (dim,), jnp.float32))
    scale = gamma / jnp.sqrt(var + eps)
    shift = beta - mean * scale
    return scale, shift


def make_params(key, dim_visual=1000, dim_text=768, dim_cate=152, dim_proj=100, num_class=2):
    ks = jax.random.split(key, 11)
    wv, bv = _linear_params(ks[0], dim_visual, dim_proj)
    sv, tv = _bn_fold(ks[1], dim_proj)
    wt, bt = _linear_params(ks[2], dim_text, dim_proj)
    st, tt = _bn_fold(ks[3], dim_proj)
    wcate, bcate = _linear_params(ks[4], dim_cate, dim_proj)
    sc, tc = _bn_fold(ks[5], dim_proj)
    wlav, blav = _linear_params(ks[6], dim_visual, dim_proj)    # layer_attn_visual
    wlat, blat = _linear_params(ks[7], dim_text, dim_proj)      # layer_attn_text
    wa, ba = _linear_params(ks[8], 3 * dim_proj, 3 * dim_proj)  # fc_as_self_attn
    sa, ta = _bn_fold(ks[9], 3 * dim_proj)
    wcls, bcls = _linear_params(ks[10], 3 * dim_proj, num_class)
    return (wv, bv, sv, tv, wt, bt, st, tt, wcate, bcate, sc, tc,
            wlav, blav, wlat, blat, wa, ba, sa, ta, wcls, bcls)


def prepare_kernel_params(params):
    """Fold BN into Linear weights, merge same-LHS weight pairs, re-block
    fc_as_self_attn, pack biases into one lane-aligned row, cast weights bf16."""
    (wv, bv, sv, tv, wt, bt, st, tt, wcate, bcate, sc, tc,
     wlav, blav, wlat, blat, wa, ba, sa, ta, wcls, bcls) = params

    P = wv.shape[1]                  # dim_proj (100)
    C = wcls.shape[1]                # num_class
    Pp = _round_up(P, LANE)          # 128
    Jp = 3 * Pp                      # 384 (joint width as built in-kernel)
    Cp = _round_up(C, LANE)          # 128

    def pad_cols(w, cols):
        return jnp.pad(w, ((0, 0), (0, cols - w.shape[1])))

    def pad_rows_cols(w, rows, cols):
        return jnp.pad(w, ((0, rows - w.shape[0]), (0, cols - w.shape[1])))

    def pad_vec(b, cols):
        return jnp.pad(b, (0, cols - b.shape[-1]))

    # fold BN into the projection weights:  W' = W*scale,  b' = b*scale + shift
    wv_f, bv_f = wv * sv, bv * sv + tv
    wt_f, bt_f = wt * st, bt * st + tt
    wc_f, bc_f = wcate * sc, bcate * sc + tc

    # merged same-LHS weights: [proj | layer_attn], each half zero-padded to Pp lanes
    wvis = jnp.concatenate([pad_cols(wv_f, Pp), pad_cols(wlav, Pp)],
                           axis=1).astype(jnp.bfloat16)            # (Dv, 2Pp)
    wtxt = jnp.concatenate([pad_cols(wt_f, Pp), pad_cols(wlat, Pp)],
                           axis=1).astype(jnp.bfloat16)            # (Dt, 2Pp)
    wcate_k = pad_cols(wc_f, Pp).astype(jnp.bfloat16)              # (Dc, Pp)

    # fc_as_self_attn with self_attn_bn folded; rows re-blocked to match the
    # in-kernel joint layout [masked_v(Pp) | masked_e(Pp) | cate(Pp)]
    wa_f = wa * sa
    wa_k = jnp.concatenate(
        [pad_rows_cols(wa_f[i * P:(i + 1) * P, :], Pp, Jp) for i in range(3)],
        axis=0).astype(jnp.bfloat16)                               # (Jp, Jp)
    ba_f = ba * sa + ta

    # classifier: rows padded to Jp, output lanes padded to Cp (sliced outside)
    wcls_k = pad_rows_cols(wcls, Jp, Cp).astype(jnp.bfloat16)      # (Jp, Cp)

    # biases packed into one lane-aligned f32 row: [bv|blav | bt|blat | bcate | ba | bcls]
    biases = jnp.concatenate([
        pad_vec(bv_f, Pp), pad_vec(blav, Pp),
        pad_vec(bt_f, Pp), pad_vec(blat, Pp),
        pad_vec(bc_f, Pp),
        pad_vec(ba_f, Jp),
        pad_vec(bcls, Cp),
    ]).reshape(1, -1).astype(jnp.float32)                          # (1, 5Pp+Jp+Cp)

    return (wvis, wtxt, wcate_k, wa_k, wcls_k, biases)


# ----------------------------- reference (pure JAX, f32) ----------------------
def mm_cate_head_ref(f_i, e_i, c_i, params):
    (wv, bv, sv, tv, wt, bt, st, tt, wcate, bcate, sc, tc,
     wlav, blav, wlat, blat, wa, ba, sa, ta, wcls, bcls) = params
    f_tilde = jnp.maximum((f_i @ wv + bv) * sv + tv, 0.0)
    e_tilde = jnp.maximum((e_i @ wt + bt) * st + tt, 0.0)
    alpha_v = jax.nn.sigmoid(e_i @ wlat + blat)
    alpha_e = jax.nn.sigmoid(f_i @ wlav + blav)
    masked_v = alpha_v * f_tilde
    masked_e = alpha_e * e_tilde
    cate_repr = jnp.maximum((c_i @ wcate + bcate) * sc + tc, 0.0)
    joint = jnp.concatenate([masked_v, masked_e, cate_repr], axis=1)
    mid = (joint @ wa + ba) * sa + ta
    return jnp.maximum(mid, 0.0) @ wcls + bcls


# ----------------------------- main -------------------------------------------
if __name__ == "__main__":
    key = jax.random.PRNGKey(0)
    k_f, k_e, k_c, k_p = jax.random.split(key, 4)

    B = 8
    dim_visual, dim_text, dim_cate, dim_proj, num_class = 1000, 768, 152, 100, 2

    # synthetic encoder outputs (DenseNet201 logits / BERT pooled output / categorical)
    f_i = jax.random.normal(k_f, (B, dim_visual), jnp.float32)
    e_i = jax.random.normal(k_e, (B, dim_text), jnp.float32)
    c_i = jax.random.normal(k_c, (B, dim_cate), jnp.float32)

    params = make_params(k_p, dim_visual, dim_text, dim_cate, dim_proj, num_class)
    kparams = prepare_kernel_params(params)

    out = mm_cate_head(f_i, e_i, c_i, kparams, num_class=num_class)
    jax.block_until_ready(out)

    ref = mm_cate_head_ref(f_i, e_i, c_i, params)
    # bf16 weights/activations/output with f32 MXU accumulation -> looser tolerance
    np.testing.assert_allclose(np.asarray(out), np.asarray(ref), rtol=5e-2, atol=5e-2)

    print("KERNEL_OK")
</pallas_src>

<mosaic_0001>
module attributes {stable_mosaic.version = 11 : i64} {
  func.func @_mm_cate_head_kernel(%arg0: i32, %arg1: memref<16x1000xf32, #tpu.memory_space<vmem>>, %arg2: memref<16x768xf32, #tpu.memory_space<vmem>>, %arg3: memref<16x152xf32, #tpu.memory_space<vmem>>, %arg4: memref<1000x256xbf16, #tpu.memory_space<vmem>>, %arg5: memref<768x256xbf16, #tpu.memory_space<vmem>>, %arg6: memref<152x128xbf16, #tpu.memory_space<vmem>>, %arg7: memref<384x384xbf16, #tpu.memory_space<vmem>>, %arg8: memref<384x128xbf16, #tpu.memory_space<vmem>>, %arg9: memref<1x1152xf32, #tpu.memory_space<vmem>>, %arg10: memref<16x128xbf16, #tpu.memory_space<vmem>>) attributes {dimension_semantics = [#tpu.dimension_semantics<parallel>], iteration_bounds = array<i64: 1>, scalar_prefetch = 0 : i64, scratch_operands = 0 : i64, tpu.core_type = #tpu.core_type<tc>, window_params = [{transform_indices = @transform_0, window_bounds = array<i64: 16, 1000>}, {transform_indices = @transform_1, window_bounds = array<i64: 16, 768>}, {transform_indices = @transform_2, window_bounds = array<i64: 16, 152>}, {pipeline_mode = #tpu.pipeline_mode<synchronous>, transform_indices = @transform_3, window_bounds = array<i64: 1000, 256>}, {pipeline_mode = #tpu.pipeline_mode<synchronous>, transform_indices = @transform_4, window_bounds = array<i64: 768, 256>}, {pipeline_mode = #tpu.pipeline_mode<synchronous>, transform_indices = @transform_5, window_bounds = array<i64: 152, 128>}, {pipeline_mode = #tpu.pipeline_mode<synchronous>, transform_indices = @transform_6, window_bounds = array<i64: 384, 384>}, {pipeline_mode = #tpu.pipeline_mode<synchronous>, transform_indices = @transform_7, window_bounds = array<i64: 384, 128>}, {pipeline_mode = #tpu.pipeline_mode<synchronous>, transform_indices = @transform_8, window_bounds = array<i64: 1, 1152>}, {transform_indices = @transform_9, window_bounds = array<i64: 16, 128>}]} {
    %c0 = arith.constant 0 : index
    %c0_0 = arith.constant 0 : index
    %0 = vector.load %arg1[%c0, %c0_0] : memref<16x1000xf32, #tpu.memory_space<vmem>>, vector<16x1000xf32>
    %1 = arith.truncf %0 : vector<16x1000xf32> to vector<16x1000xbf16>
    %c0_1 = arith.constant 0 : index
    %c0_2 = arith.constant 0 : index
    %2 = vector.load %arg2[%c0_1, %c0_2] : memref<16x768xf32, #tpu.memory_space<vmem>>, vector<16x768xf32>
    %3 = arith.truncf %2 : vector<16x768xf32> to vector<16x768xbf16>
    %c0_3 = arith.constant 0 : index
    %c0_4 = arith.constant 0 : index
    %4 = vector.load %arg3[%c0_3, %c0_4] : memref<16x152xf32, #tpu.memory_space<vmem>>, vector<16x152xf32>
    %5 = arith.truncf %4 : vector<16x152xf32> to vector<16x152xbf16>
    %c0_5 = arith.constant 0 : index
    %c0_6 = arith.constant 0 : index
    %6 = vector.load %arg9[%c0_5, %c0_6] : memref<1x1152xf32, #tpu.memory_space<vmem>>, vector<1x256xf32>
    %c0_7 = arith.constant 0 : index
    %c256 = arith.constant 256 : index
    %7 = vector.load %arg9[%c0_7, %c256] : memref<1x1152xf32, #tpu.memory_space<vmem>>, vector<1x256xf32>
    %c0_8 = arith.constant 0 : index
    %c512 = arith.constant 512 : index
    %8 = vector.load %arg9[%c0_8, %c512] : memref<1x1152xf32, #tpu.memory_space<vmem>>, vector<1x128xf32>
    %c0_9 = arith.constant 0 : index
    %c640 = arith.constant 640 : index
    %9 = vector.load %arg9[%c0_9, %c640] : memref<1x1152xf32, #tpu.memory_space<vmem>>, vector<1x384xf32>
    %c0_10 = arith.constant 0 : index
    %c1024 = arith.constant 1024 : index
    %10 = vector.load %arg9[%c0_10, %c1024] : memref<1x1152xf32, #tpu.memory_space<vmem>>, vector<1x128xf32>
    %c0_11 = arith.constant 0 : index
    %c0_12 = arith.constant 0 : index
    %11 = vector.load %arg4[%c0_11, %c0_12] : memref<1000x256xbf16, #tpu.memory_space<vmem>>, vector<1000x256xbf16>
    %cst = arith.constant dense<0.000000e+00> : vector<16x256xf32>
    %12 = tpu.matmul %1, %11, %cst {dimension_numbers = #tpu.dot_dimension_numbers<[1], [0], [0], [1], [0, 0, 1, 1], [], []>} : vector<16x1000xbf16>, vector<1000x256xbf16>, vector<16x256xf32> -> vector<16x256xf32>
    %13 = vector.broadcast %6 : vector<1x256xf32> to vector<16x256xf32>
    %14 = arith.addf %12, %13 : vector<16x256xf32>
    %15 = vector.extract_strided_slice %14 {offsets = [0, 0], sizes = [16, 128], strides = [1, 1]} : vector<16x256xf32> to vector<16x128xf32>
    %cst_13 = arith.constant 0.000000e+00 : f32
    %16 = vector.broadcast %cst_13 : f32 to vector<16x128xf32>
    %17 = arith.maximumf %15, %16 : vector<16x128xf32>
    %18 = vector.extract_strided_slice %14 {offsets = [0, 128], sizes = [16, 128], strides = [1, 1]} : vector<16x256xf32> to vector<16x128xf32>
    %19 = arith.negf %18 : vector<16x128xf32>
    %20 = math.exp %19 : vector<16x128xf32>
    %cst_14 = arith.constant 1.000000e+00 : f32
    %21 = vector.broadcast %cst_14 : f32 to vector<16x128xf32>
    %22 = arith.addf %21, %20 : vector<16x128xf32>
    %23 = arith.divf %21, %22 : vector<16x128xf32>
    %c0_15 = arith.constant 0 : index
    %c0_16 = arith.constant 0 : index
    %24 = vector.load %arg5[%c0_15, %c0_16] : memref<768x256xbf16, #tpu.memory_space<vmem>>, vector<768x256xbf16>
    %cst_17 = arith.constant dense<0.000000e+00> : vector<16x256xf32>
    %25 = tpu.matmul %3, %24, %cst_17 {dimension_numbers = #tpu.dot_dimension_numbers<[1], [0], [0], [1], [0, 0, 1, 1], [], []>} : vector<16x768xbf16>, vector<768x256xbf16>, vector<16x256xf32> -> vector<16x256xf32>
    %26 = vector.broadcast %7 : vector<1x256xf32> to vector<16x256xf32>
    %27 = arith.addf %25, %26 : vector<16x256xf32>
    %28 = vector.extract_strided_slice %27 {offsets = [0, 0], sizes = [16, 128], strides = [1, 1]} : vector<16x256xf32> to vector<16x128xf32>
    %cst_18 = arith.constant 0.000000e+00 : f32
    %29 = vector.broadcast %cst_18 : f32 to vector<16x128xf32>
    %30 = arith.maximumf %28, %29 : vector<16x128xf32>
    %31 = vector.extract_strided_slice %27 {offsets = [0, 128], sizes = [16, 128], strides = [1, 1]} : vector<16x256xf32> to vector<16x128xf32>
    %32 = arith.negf %31 : vector<16x128xf32>
    %33 = math.exp %32 : vector<16x128xf32>
    %cst_19 = arith.constant 1.000000e+00 : f32
    %34 = vector.broadcast %cst_19 : f32 to vector<16x128xf32>
    %35 = arith.addf %34, %33 : vector<16x128xf32>
    %36 = arith.divf %34, %35 : vector<16x128xf32>
    %c0_20 = arith.constant 0 : index
    %c0_21 = arith.constant 0 : index
    %37 = vector.load %arg6[%c0_20, %c0_21] : memref<152x128xbf16, #tpu.memory_space<vmem>>, vector<152x128xbf16>
    %cst_22 = arith.constant dense<0.000000e+00> : vector<16x128xf32>
    %38 = tpu.matmul %5, %37, %cst_22 {dimension_numbers = #tpu.dot_dimension_numbers<[1], [0], [0], [1], [0, 0, 1, 1], [], []>} : vector<16x152xbf16>, vector<152x128xbf16>, vector<16x128xf32> -> vector<16x128xf32>
    %39 = vector.broadcast %8 : vector<1x128xf32> to vector<16x128xf32>
    %40 = arith.addf %38, %39 : vector<16x128xf32>
    %cst_23 = arith.constant 0.000000e+00 : f32
    %41 = vector.broadcast %cst_23 : f32 to vector<16x128xf32>
    %42 = arith.maximumf %40, %41 : vector<16x128xf32>
    %43 = arith.mulf %36, %17 : vector<16x128xf32>
    %44 = arith.mulf %23, %30 : vector<16x128xf32>
    %45 = tpu.concatenate %43, %44, %42 in 1 : vector<16x128xf32>, vector<16x128xf32>, vector<16x128xf32> -> vector<16x384xf32>
    %46 = arith.truncf %45 : vector<16x384xf32> to vector<16x384xbf16>
    %c0_24 = arith.constant 0 : index
    %c0_25 = arith.constant 0 : index
    %47 = vector.load %arg7[%c0_24, %c0_25] : memref<384x384xbf16, #tpu.memory_space<vmem>>, vector<384x384xbf16>
    %cst_26 = arith.constant dense<0.000000e+00> : vector<16x384xf32>
    %48 = tpu.matmul %46, %47, %cst_26 {dimension_numbers = #tpu.dot_dimension_numbers<[1], [0], [0], [1], [0, 0, 1, 1], [], []>} : vector<16x384xbf16>, vector<384x384xbf16>, vector<16x384xf32> -> vector<16x384xf32>
    %49 = vector.broadcast %9 : vector<1x384xf32> to vector<16x384xf32>
    %50 = arith.addf %48, %49 : vector<16x384xf32>
    %cst_27 = arith.constant 0.000000e+00 : f32
    %51 = vector.broadcast %cst_27 : f32 to vector<16x384xf32>
    %52 = arith.maximumf %50, %51 : vector<16x384xf32>
    %53 = arith.truncf %52 : vector<16x384xf32> to vector<16x384xbf16>
    %c0_28 = arith.constant 0 : index
    %c0_29 = arith.constant 0 : index
    %54 = vector.load %arg8[%c0_28, %c0_29] : memref<384x128xbf16, #tpu.memory_space<vmem>>, vector<384x128xbf16>
    %cst_30 = arith.constant dense<0.000000e+00> : vector<16x128xf32>
    %55 = tpu.matmul %53, %54, %cst_30 {dimension_numbers = #tpu.dot_dimension_numbers<[1], [0], [0], [1], [0, 0, 1, 1], [], []>} : vector<16x384xbf16>, vector<384x128xbf16>, vector<16x128xf32> -> vector<16x128xf32>
    %56 = vector.broadcast %10 : vector<1x128xf32> to vector<16x128xf32>
    %57 = arith.addf %55, %56 : vector<16x128xf32>
    %58 = arith.truncf %57 : vector<16x128xf32> to vector<16x128xbf16>
    %c0_31 = arith.constant 0 : index
    %c0_32 = arith.constant 0 : index
    %59 = vector.load %arg10[%c0_31, %c0_32] : memref<16x128xbf16, #tpu.memory_space<vmem>>, vector<16x128xbf16>
    tpu.vector_store %arg10[%c0_31, %c0_32], %58 {strides = array<i32>} : memref<16x128xbf16, #tpu.memory_space<vmem>>, vector<16x128xbf16>,
    return
  }
  func.func @transform_0(%arg0: i32) -> (i32, i32) {
    %c0_i32 = arith.constant 0 : i32
    %c0_i32_0 = arith.constant 0 : i32
    return %arg0, %c0_i32 : i32, i32
  }
  func.func @transform_1(%arg0: i32) -> (i32, i32) {
    %c0_i32 = arith.constant 0 : i32
    %c0_i32_0 = arith.constant 0 : i32
    return %arg0, %c0_i32 : i32, i32
  }
  func.func @transform_2(%arg0: i32) -> (i32, i32) {
    %c0_i32 = arith.constant 0 : i32
    %c0_i32_0 = arith.constant 0 : i32
    return %arg0, %c0_i32 : i32, i32
  }
  func.func @transform_3(%arg0: i32) -> (i32, i32) {
    %c0_i32 = arith.constant 0 : i32
    %c0_i32_0 = arith.constant 0 : i32
    %c0_i32_1 = arith.constant 0 : i32
    return %c0_i32, %c0_i32_0 : i32, i32
  }
  func.func @transform_4(%arg0: i32) -> (i32, i32) {
    %c0_i32 = arith.constant 0 : i32
    %c0_i32_0 = arith.constant 0 : i32
    %c0_i32_1 = arith.constant 0 : i32
    return %c0_i32, %c0_i32_0 : i32, i32
  }
  func.func @transform_5(%arg0: i32) -> (i32, i32) {
    %c0_i32 = arith.constant 0 : i32
    %c0_i32_0 = arith.constant 0 : i32
    %c0_i32_1 = arith.constant 0 : i32
    return %c0_i32, %c0_i32_0 : i32, i32
  }
  func.func @transform_6(%arg0: i32) -> (i32, i32) {
    %c0_i32 = arith.constant 0 : i32
    %c0_i32_0 = arith.constant 0 : i32
    %c0_i32_1 = arith.constant 0 : i32
    return %c0_i32, %c0_i32_0 : i32, i32
  }
  func.func @transform_7(%arg0: i32) -> (i32, i32) {
    %c0_i32 = arith.constant 0 : i32
    %c0_i32_0 = arith.constant 0 : i32
    %c0_i32_1 = arith.constant 0 : i32
    return %c0_i32, %c0_i32_0 : i32, i32
  }
  func.func @transform_8(%arg0: i32) -> (i32, i32) {
    %c0_i32 = arith.constant 0 : i32
    %c0_i32_0 = arith.constant 0 : i32
    %c0_i32_1 = arith.constant 0 : i32
    return %c0_i32, %c0_i32_0 : i32, i32
  }
  func.func @transform_9(%arg0: i32) -> (i32, i32) {
    %c0_i32 = arith.constant 0 : i32
    %c0_i32_0 = arith.constant 0 : i32
    return %arg0, %c0_i32 : i32, i32
  }
}

</mosaic_0001>

<llo_original>
// kernel: mm_cate_head.1
$region0: #{mm_cate_head.1}
  #allocation0 [shape = 'u32[]', space=smem, size = 0x4, offset = 0x4, fixed_abs, tag = 'smem constant byte address 0x4 - core index']
  #allocation1 [shape = 'u32[144,128]{1,0:T(1,128)}', space=vmem, size = 0x12000, scoped, tag = 'internal scratch']
  %s0 = inlined_call_operand.vmem [shape: f32[16,1000], index: 0, kind: input, shape index: {}]
  %s1 = inlined_call_operand.vmem [shape: f32[16,768], index: 1, kind: input, shape index: {}]
  %s2 = inlined_call_operand.vmem [shape: f32[16,152], index: 2, kind: input, shape index: {}]
  %s3 = inlined_call_operand.hbm [shape: bf16[1000,256], index: 3, kind: input, shape index: {}]
  %s4 = inlined_call_operand.hbm [shape: bf16[768,256], index: 4, kind: input, shape index: {}]
  %s5 = inlined_call_operand.vmem [shape: bf16[152,128], index: 5, kind: input, shape index: {}]
  %s6 = inlined_call_operand.hbm [shape: bf16[384,384], index: 6, kind: input, shape index: {}]
  %s7 = inlined_call_operand.vmem [shape: bf16[384,128], index: 7, kind: input, shape index: {}]
  %s8 = inlined_call_operand.vmem [shape: f32[1,1152], index: 8, kind: input, shape index: {}]
  %s9 = inlined_call_operand.vmem [shape: bf16[16,128], index: 9, kind: output, shape index: {}]
  %s10 = sld [smem:[#allocation0]]
  $region58: #{mm_cate_head.1} parent=0
    _
  %s12 = ssub.s32 1, %s10
  %s13 = scalar_select 0, %s12, %s10
  $region1: #{mm_cate_head.1} parent=0
    #allocation2 [shape = 'u8[512000]{0}', space=vmem, size = 0x7d000, scoped, tag = 'input window, operand 3, single buffered']
    #allocation3 [shape = 's32[1]{0}', space=sflag, size = 0x4, scoped, tag = 'scoped memory for mm_cate_head.1']
    #allocation4 [shape = 'u8[393216]{0}', space=vmem, size = 0x60000, scoped, tag = 'input window, operand 4, single buffered']
    #allocation5 [shape = 's32[1]{0}', space=sflag, size = 0x4, scoped, tag = 'scoped memory for mm_cate_head.1']
    #allocation6 [shape = 'u8[294912]{0}', space=vmem, size = 0x48000, scoped, tag = 'input window, operand 6, single buffered']
    %14 = vsyncpa [#allocation3], 0
    %15 = vsyncpa [#allocation5], 0
    // Predicated region
    $region2: #{mm_cate_head.1} parent=1 // pred_check
      _
    $region3: #{mm_cate_head.1} parent=1 // pred_check_branch
      %17 = sbr.rel (0) target = $region5
    $region4: #{mm_cate_head.1} parent=1 // pred_region
      _
    $region5: #{mm_cate_head.1} parent=1 // pred_fallthru
      _
    // Predicated region
    $region6: #{mm_cate_head.1} parent=1 // pred_check
      _
    $region7: #{mm_cate_head.1} parent=1 // pred_check_branch
      %19 = sbr.rel (0) target = $region9
    $region8: #{mm_cate_head.1} parent=1 // pred_region
      _
    $region9: #{mm_cate_head.1} parent=1 // pred_fallthru
      _
    // Predicated region
    $region10: #{mm_cate_head.1} parent=1 // pred_check
      _
    $region11: #{mm_cate_head.1} parent=1 // pred_check_branch
      %21 = sbr.rel (0) target = $region13
    $region12: #{mm_cate_head.1} parent=1 // pred_region
      _
    $region13: #{mm_cate_head.1} parent=1 // pred_fallthru
      _
    // Predicated region
    $region14: #{mm_cate_head.1} parent=1 // pred_check
      _
    $region15: #{mm_cate_head.1} parent=1 // pred_check_branch
      %23 = sbr.rel (0) target = $region17
    $region16: #{mm_cate_head.1} parent=1 // pred_region
      %s25 = ssub.s32 16000, 16000
      %26 = vsyncadd [#allocation3], %s25
      %s27 = sshll.u32 [#allocation2], 4
      %s28 = int_to_ptr.vmem [resolvable:$true] %s27
      %33 = dma.hbm_to_vmem [thread:$0]  %s3, 16000, %s28, [#allocation3], 128, 128, 8
    $region17: #{mm_cate_head.1} parent=1 // pred_fallthru
      _
    // Predicated region
    $region18: #{mm_cate_head.1} parent=1 // pred_check
      _
    $region19: #{mm_cate_head.1} parent=1 // pred_check_branch
      %35 = sbr.rel (0) target = $region21
    $region20: #{mm_cate_head.1} parent=1 // pred_region
      %s37 = ssub.s32 12288, 12288
      %38 = vsyncadd [#allocation5], %s37
      %s39 = sshll.u32 [#allocation4], 4
      %s40 = int_to_ptr.vmem [resolvable:$true] %s39
      %45 = dma.hbm_to_vmem [thread:$0]  %s4, 12288, %s40, [#allocation5], 128, 128, 8
    $region21: #{mm_cate_head.1} parent=1 // pred_fallthru
      _
    // Predicated region
    $region22: #{mm_cate_head.1} parent=1 // pred_check
      _
    $region23: #{mm_cate_head.1} parent=1 // pred_check_branch
      %47 = sbr.rel (0) target = $region25
    $region24: #{mm_cate_head.1} parent=1 // pred_region
      _
    $region25: #{mm_cate_head.1} parent=1 // pred_fallthru
      _
    // Predicated region
    $region26: #{mm_cate_head.1} parent=1 // pred_check
      _
    $region27: #{mm_cate_head.1} parent=1 // pred_check_branch
      %49 = sbr.rel (0) target = $region29
    $region28: #{mm_cate_head.1} parent=1 // pred_region
      %s51 = ssub.s32 9216, 9216
      %52 = vsyncadd [#allocation5], %s51
      %s53 = sshll.u32 [#allocation6], 4
      %s54 = int_to_ptr.vmem [resolvable:$true] %s53
      %59 = dma.hbm_to_vmem [thread:$0]  %s6, 9216, %s54, [#allocation5], 192, 192, 12
    $region29: #{mm_cate_head.1} parent=1 // pred_fallthru
      _
    // Predicated region
    $region30: #{mm_cate_head.1} parent=1 // pred_check
      _
    $region31: #{mm_cate_head.1} parent=1 // pred_check_branch
      %61 = sbr.rel (0) target = $region33
    $region32: #{mm_cate_head.1} parent=1 // pred_region
      _
    $region33: #{mm_cate_head.1} parent=1 // pred_fallthru
      _
    // Predicated region
    $region34: #{mm_cate_head.1} parent=1 // pred_check
      _
    $region35: #{mm_cate_head.1} parent=1 // pred_check_branch
      %63 = sbr.rel (0) target = $region37
    $region36: #{mm_cate_head.1} parent=1 // pred_region
      _
    $region37: #{mm_cate_head.1} parent=1 // pred_fallthru
      _
    // Predicated region
    $region38: #{mm_cate_head.1} parent=1 // pred_check
      _
    $region39: #{mm_cate_head.1} parent=1 // pred_check_branch
      %65 = sbr.rel (0) target = $region41
    $region40: #{mm_cate_head.1} parent=1 // pred_region
      %66 = dma.done [#allocation3], 16000
    $region41: #{mm_cate_head.1} parent=1 // pred_fallthru
      _
    // Predicated region
    $region42: #{mm_cate_head.1} parent=1 // pred_check
      _
    $region43: #{mm_cate_head.1} parent=1 // pred_check_branch
      %68 = sbr.rel (0) target = $region45
    $region44: #{mm_cate_head.1} parent=1 // pred_region
      %69 = dma.done [#allocation5], 12288
    $region45: #{mm_cate_head.1} parent=1 // pred_fallthru
      _
    // Predicated region
    $region46: #{mm_cate_head.1} parent=1 // pred_check
      _
    $region47: #{mm_cate_head.1} parent=1 // pred_check_branch
      %71 = sbr.rel (0) target = $region49
    $region48: #{mm_cate_head.1} parent=1 // pred_region
      %72 = dma.done [#allocation5], 9216
    $region49: #{mm_cate_head.1} parent=1 // pred_fallthru
      _
    %v74 = vld [vmem:[%s0] sm:$0xff]
    %v75 = vld [vmem:[%s0 + $0x8] sm:$0xff]
    %v76 = vld [vmem:[%s0 + $0x10] sm:$0xff]
    %v77 = vld [vmem:[%s0 + $0x18] sm:$0xff]
    %v78 = vld [vmem:[%s0 + $0x20] sm:$0xff]
    %v79 = vld [vmem:[%s0 + $0x28] sm:$0xff]
    %v80 = vld [vmem:[%s0 + $0x30] sm:$0xff]
    %v81 = vld [vmem:[%s0 + $0x38] sm:$0xff]
    %v82 = vld [vmem:[%s0 + $0x40] sm:$0xff]
    %v83 = vld [vmem:[%s0 + $0x48] sm:$0xff]
    %v84 = vld [vmem:[%s0 + $0x50] sm:$0xff]
    %v85 = vld [vmem:[%s0 + $0x58] sm:$0xff]
    %v86 = vld [vmem:[%s0 + $0x60] sm:$0xff]
    %v87 = vld [vmem:[%s0 + $0x68] sm:$0xff]
    %v88 = vld [vmem:[%s0 + $0x70] sm:$0xff]
    %v89 = vld [vmem:[%s0 + $0x78] sm:$0xff]
    %v90 = vpack.c.bf16 %v82, %v74
    %v91 = vpack.c.bf16 %v83, %v75
    %v92 = vpack.c.bf16 %v84, %v76
    %v93 = vpack.c.bf16 %v85, %v77
    %v94 = vpack.c.bf16 %v86, %v78
    %v95 = vpack.c.bf16 %v87, %v79
    %v96 = vpack.c.bf16 %v88, %v80
    %v97 = vpack.c.bf16 %v89, %v81
    %v98 = vld [vmem:[%s1] sm:$0xff]
    %v99 = vld [vmem:[%s1 + $0x8] sm:$0xff]
    %v100 = vld [vmem:[%s1 + $0x10] sm:$0xff]
    %v101 = vld [vmem:[%s1 + $0x18] sm:$0xff]
    %v102 = vld [vmem:[%s1 + $0x20] sm:$0xff]
    %v103 = vld [vmem:[%s1 + $0x28] sm:$0xff]
    %v104 = vld [vmem:[%s1 + $0x30] sm:$0xff]
    %v105 = vld [vmem:[%s1 + $0x38] sm:$0xff]
    %v106 = vld [vmem:[%s1 + $0x40] sm:$0xff]
    %v107 = vld [vmem:[%s1 + $0x48] sm:$0xff]
    %v108 = vld [vmem:[%s1 + $0x50] sm:$0xff]
    %v109 = vld [vmem:[%s1 + $0x58] sm:$0xff]
    %v110 = vpack.c.bf16 %v104, %v98
    %v111 = vpack.c.bf16 %v105, %v99
    %v112 = vpack.c.bf16 %v106, %v100
    %v113 = vpack.c.bf16 %v107, %v101
    %v114 = vpack.c.bf16 %v108, %v102
    %v115 = vpack.c.bf16 %v109, %v103
    %v116 = vld [vmem:[%s2] sm:$0xff]
    %v117 = vld [vmem:[%s2 + $0x8] sm:$0xff]
    %v118 = vld [vmem:[%s2 + $0x10] sm:$0xff]
    %v119 = vld [vmem:[%s2 + $0x18] sm:$0xff]
    %v120 = vpack.c.bf16 %v118, %v116
    %v121 = vpack.c.bf16 %v119, %v117
    %v122 = vld [vmem:[%s8] sm:$0x3]
    %v123 = vld [vmem:[%s8 + $0x2] sm:$0x3]
    %v124 = vld [vmem:[%s8 + $0x4] sm:$0x1]
    %v125 = vld [vmem:[%s8 + $0x5] sm:$0x7]
    %v126 = vld [vmem:[%s8 + $0x8] sm:$0x1]
    %v127 = vld [vmem:[#allocation2] sm:$0xff]
    %v128 = vld [vmem:[#allocation2 + $0x8] sm:$0xff]
    %v129 = vld [vmem:[#allocation2 + $0x10] sm:$0xff]
    %v130 = vld [vmem:[#allocation2 + $0x18] sm:$0xff]
    %v131 = vld [vmem:[#allocation2 + $0x20] sm:$0xff]
    %v132 = vld [vmem:[#allocation2 + $0x28] sm:$0xff]
    %v133 = vld [vmem:[#allocation2 + $0x30] sm:$0xff]
    %v134 = vld [vmem:[#allocation2 + $0x38] sm:$0xff]
    %v135 = vld [vmem:[#allocation2 + $0x40] sm:$0xff]
    %v136 = vld [vmem:[#allocation2 + $0x48] sm:$0xff]
    %v137 = vld [vmem:[#allocation2 + $0x50] sm:$0xff]
    %v138 = vld [vmem:[#allocation2 + $0x58] sm:$0xff]
    %v139 = vld [vmem:[#allocation2 + $0x60] sm:$0xff]
    %v140 = vld [vmem:[#allocation2 + $0x68] sm:$0xff]
    %v141 = vld [vmem:[#allocation2 + $0x70] sm:$0xff]
    %v142 = vld [vmem:[#allocation2 + $0x78] sm:$0xff]
    %v143 = vld [vmem:[#allocation2 + $0x80] sm:$0xff]
    %v144 = vld [vmem:[#allocation2 + $0x88] sm:$0xff]
    %v145 = vld [vmem:[#allocation2 + $0x90] sm:$0xff]
    %v146 = vld [vmem:[#allocation2 + $0x98] sm:$0xff]
    %v147 = vld [vmem:[#allocation2 + $0xa0] sm:$0xff]
    %v148 = vld [vmem:[#allocation2 + $0xa8] sm:$0xff]
    %v149 = vld [vmem:[#allocation2 + $0xb0] sm:$0xff]
    %v150 = vld [vmem:[#allocation2 + $0xb8] sm:$0xff]
    %v151 = vld [vmem:[#allocation2 + $0xc0] sm:$0xff]
    %v152 = vld [vmem:[#allocation2 + $0xc8] sm:$0xff]
    %v153 = vld [vmem:[#allocation2 + $0xd0] sm:$0xff]
    %v154 = vld [vmem:[#allocation2 + $0xd8] sm:$0xff]
    %v155 = vld [vmem:[#allocation2 + $0xe0] sm:$0xff]
    %v156 = vld [vmem:[#allocation2 + $0xe8] sm:$0xff]
    %v157 = vld [vmem:[#allocation2 + $0xf0] sm:$0xff]
    %v158 = vld [vmem:[#allocation2 + $0xf8] sm:$0xff]
    %v159 = vld [vmem:[#allocation2 + $0x100] sm:$0xff]
    %v160 = vld [vmem:[#allocation2 + $0x108] sm:$0xff]
    %v161 = vld [vmem:[#allocation2 + $0x110] sm:$0xff]
    %v162 = vld [vmem:[#allocation2 + $0x118] sm:$0xff]
    %v163 = vld [vmem:[#allocation2 + $0x120] sm:$0xff]
    %v164 = vld [vmem:[#allocation2 + $0x128] sm:$0xff]
    %v165 = vld [vmem:[#allocation2 + $0x130] sm:$0xff]
    %v166 = vld [vmem:[#allocation2 + $0x138] sm:$0xff]
    %v167 = vld [vmem:[#allocation2 + $0x140] sm:$0xff]
    %v168 = vld [vmem:[#allocation2 + $0x148] sm:$0xff]
    %v169 = vld [vmem:[#allocation2 + $0x150] sm:$0xff]
    %v170 = vld [vmem:[#allocation2 + $0x158] sm:$0xff]
    %v171 = vld [vmem:[#allocation2 + $0x160] sm:$0xff]
    %v172 = vld [vmem:[#allocation2 + $0x168] sm:$0xff]
    %v173 = vld [vmem:[#allocation2 + $0x170] sm:$0xff]
    %v174 = vld [vmem:[#allocation2 + $0x178] sm:$0xff]
    %v175 = vld [vmem:[#allocation2 + $0x180] sm:$0xff]
    %v176 = vld [vmem:[#allocation2 + $0x188] sm:$0xff]
    %v177 = vld [vmem:[#allocation2 + $0x190] sm:$0xff]
    %v178 = vld [vmem:[#allocation2 + $0x198] sm:$0xff]
    %v179 = vld [vmem:[#allocation2 + $0x1a0] sm:$0xff]
    %v180 = vld [vmem:[#allocation2 + $0x1a8] sm:$0xff]
    %v181 = vld [vmem:[#allocation2 + $0x1b0] sm:$0xff]
    %v182 = vld [vmem:[#allocation2 + $0x1b8] sm:$0xff]
    %v183 = vld [vmem:[#allocation2 + $0x1c0] sm:$0xff]
    %v184 = vld [vmem:[#allocation2 + $0x1c8] sm:$0xff]
    %v185 = vld [vmem:[#allocation2 + $0x1d0] sm:$0xff]
    %v186 = vld [vmem:[#allocation2 + $0x1d8] sm:$0xff]
    %v187 = vld [vmem:[#allocation2 + $0x1e0] sm:$0xff]
    %v188 = vld [vmem:[#allocation2 + $0x1e8] sm:$0xff]
    %v189 = vld [vmem:[#allocation2 + $0x1f0] sm:$0xff]
    %v190 = vld [vmem:[#allocation2 + $0x1f8] sm:$0xff]
    %v191 = vld [vmem:[#allocation2 + $0x200] sm:$0xff]
    %v192 = vld [vmem:[#allocation2 + $0x208] sm:$0xff]
    %v193 = vld [vmem:[#allocation2 + $0x210] sm:$0xff]
    %v194 = vld [vmem:[#allocation2 + $0x218] sm:$0xff]
    %v195 = vld [vmem:[#allocation2 + $0x220] sm:$0xff]
    %v196 = vld [vmem:[#allocation2 + $0x228] sm:$0xff]
    %v197 = vld [vmem:[#allocation2 + $0x230] sm:$0xff]
    %v198 = vld [vmem:[#allocation2 + $0x238] sm:$0xff]
    %v199 = vld [vmem:[#allocation2 + $0x240] sm:$0xff]
    %v200 = vld [vmem:[#allocation2 + $0x248] sm:$0xff]
    %v201 = vld [vmem:[#allocation2 + $0x250] sm:$0xff]
    %v202 = vld [vmem:[#allocation2 + $0x258] sm:$0xff]
    %v203 = vld [vmem:[#allocation2 + $0x260] sm:$0xff]
    %v204 = vld [vmem:[#allocation2 + $0x268] sm:$0xff]
    %v205 = vld [vmem:[#allocation2 + $0x270] sm:$0xff]
    %v206 = vld [vmem:[#allocation2 + $0x278] sm:$0xff]
    %v207 = vld [vmem:[#allocation2 + $0x280] sm:$0xff]
    %v208 = vld [vmem:[#allocation2 + $0x288] sm:$0xff]
    %v209 = vld [vmem:[#allocation2 + $0x290] sm:$0xff]
    %v210 = vld [vmem:[#allocation2 + $0x298] sm:$0xff]
    %v211 = vld [vmem:[#allocation2 + $0x2a0] sm:$0xff]
    %v212 = vld [vmem:[#allocation2 + $0x2a8] sm:$0xff]
    %v213 = vld [vmem:[#allocation2 + $0x2b0] sm:$0xff]
    %v214 = vld [vmem:[#allocation2 + $0x2b8] sm:$0xff]
    %v215 = vld [vmem:[#allocation2 + $0x2c0] sm:$0xff]
    %v216 = vld [vmem:[#allocation2 + $0x2c8] sm:$0xff]
    %v217 = vld [vmem:[#allocation2 + $0x2d0] sm:$0xff]
    %v218 = vld [vmem:[#allocation2 + $0x2d8] sm:$0xff]
    %v219 = vld [vmem:[#allocation2 + $0x2e0] sm:$0xff]
    %v220 = vld [vmem:[#allocation2 + $0x2e8] sm:$0xff]
    %v221 = vld [vmem:[#allocation2 + $0x2f0] sm:$0xff]
    %v222 = vld [vmem:[#allocation2 + $0x2f8] sm:$0xff]
    %v223 = vld [vmem:[#allocation2 + $0x300] sm:$0xff]
    %v224 = vld [vmem:[#allocation2 + $0x308] sm:$0xff]
    %v225 = vld [vmem:[#allocation2 + $0x310] sm:$0xff]
    %v226 = vld [vmem:[#allocation2 + $0x318] sm:$0xff]
    %v227 = vld [vmem:[#allocation2 + $0x320] sm:$0xff]
    %v228 = vld [vmem:[#allocation2 + $0x328] sm:$0xff]
    %v229 = vld [vmem:[#allocation2 + $0x330] sm:$0xff]
    %v230 = vld [vmem:[#allocation2 + $0x338] sm:$0xff]
    %v231 = vld [vmem:[#allocation2 + $0x340] sm:$0xff]
    %v232 = vld [vmem:[#allocation2 + $0x348] sm:$0xff]
    %v233 = vld [vmem:[#allocation2 + $0x350] sm:$0xff]
    %v234 = vld [vmem:[#allocation2 + $0x358] sm:$0xff]
    %v235 = vld [vmem:[#allocation2 + $0x360] sm:$0xff]
    %v236 = vld [vmem:[#allocation2 + $0x368] sm:$0xff]
    %v237 = vld [vmem:[#allocation2 + $0x370] sm:$0xff]
    %v238 = vld [vmem:[#allocation2 + $0x378] sm:$0xff]
    %v239 = vld [vmem:[#allocation2 + $0x380] sm:$0xff]
    %v240 = vld [vmem:[#allocation2 + $0x388] sm:$0xff]
    %v241 = vld [vmem:[#allocation2 + $0x390] sm:$0xff]
    %v242 = vld [vmem:[#allocation2 + $0x398] sm:$0xff]
    %v243 = vld [vmem:[#allocation2 + $0x3a0] sm:$0xff]
    %v244 = vld [vmem:[#allocation2 + $0x3a8] sm:$0xff]
    %v245 = vld [vmem:[#allocation2 + $0x3b0] sm:$0xff]
    %v246 = vld [vmem:[#allocation2 + $0x3b8] sm:$0xff]
    %v247 = vld [vmem:[#allocation2 + $0x3c0] sm:$0xff]
    %v248 = vld [vmem:[#allocation2 + $0x3c8] sm:$0xff]
    %v249 = vld [vmem:[#allocation2 + $0x3d0] sm:$0xff]
    %v250 = vld [vmem:[#allocation2 + $0x3d8] sm:$0xff]
    %v251 = vld [vmem:[#allocation2 + $0x3e0] sm:$0xff]
    %v253 = vlaneseq
    %v254 = vshrl.u32 %v253, 7
    %v255 = vsub.s32 0, %v254
    %v256 = vrot.slane %v122, %v255
    %v257 = vlaneseq
    %v258 = vshrl.u32 %v257, 7
    %v259 = vsub.s32 1, %v258
    %v260 = vrot.slane %v122, %v259
    %v388 = vunpack.c.l.b16 %v127
    %v389 = vunpack.c.h.b16 %v127
    %v390 = vunpack.c.l.b16 %v128
    %v391 = vunpack.c.h.b16 %v128
    %v392 = vunpack.c.l.b16 %v129
    %v393 = vunpack.c.h.b16 %v129
    %v394 = vunpack.c.l.b16 %v130
    %v395 = vunpack.c.h.b16 %v130
    %v396 = vunpack.c.l.b16 %v131
    %v397 = vunpack.c.h.b16 %v131
    %v398 = vunpack.c.l.b16 %v132
    %v399 = vunpack.c.h.b16 %v132
    %v400 = vunpack.c.l.b16 %v133
    %v401 = vunpack.c.h.b16 %v133
    %v402 = vunpack.c.l.b16 %v134
    %v403 = vunpack.c.h.b16 %v134
    %v404 = vunpack.c.l.b16 %v135
    %v405 = vunpack.c.h.b16 %v135
    %v406 = vunpack.c.l.b16 %v136
    %v407 = vunpack.c.h.b16 %v136
    %v408 = vunpack.c.l.b16 %v137
    %v409 = vunpack.c.h.b16 %v137
    %v410 = vunpack.c.l.b16 %v138
    %v411 = vunpack.c.h.b16 %v138
    %v412 = vunpack.c.l.b16 %v139
    %v413 = vunpack.c.h.b16 %v139
    %v414 = vunpack.c.l.b16 %v140
    %v415 = vunpack.c.h.b16 %v140
    %v416 = vunpack.c.l.b16 %v141
    %v417 = vunpack.c.h.b16 %v141
    %v418 = vunpack.c.l.b16 %v142
    %v419 = vunpack.c.h.b16 %v142
    %v420 = vunpack.c.l.b16 %v143
    %v421 = vunpack.c.h.b16 %v143
    %v422 = vunpack.c.l.b16 %v144
    %v423 = vunpack.c.h.b16 %v144
    %v424 = vunpack.c.l.b16 %v145
    %v425 = vunpack.c.h.b16 %v145
    %v426 = vunpack.c.l.b16 %v146
    %v427 = vunpack.c.h.b16 %v146
    %v428 = vunpack.c.l.b16 %v147
    %v429 = vunpack.c.h.b16 %v147
    %v430 = vunpack.c.l.b16 %v148
    %v431 = vunpack.c.h.b16 %v148
    %v432 = vunpack.c.l.b16 %v149
    %v433 = vunpack.c.h.b16 %v149
    %v434 = vunpack.c.l.b16 %v150
    %v435 = vunpack.c.h.b16 %v150
    %v436 = vunpack.c.l.b16 %v151
    %v437 = vunpack.c.h.b16 %v151
    %v438 = vunpack.c.l.b16 %v152
    %v439 = vunpack.c.h.b16 %v152
    %v440 = vunpack.c.l.b16 %v153
    %v441 = vunpack.c.h.b16 %v153
    %v442 = vunpack.c.l.b16 %v154
    %v443 = vunpack.c.h.b16 %v154
    %v444 = vunpack.c.l.b16 %v155
    %v445 = vunpack.c.h.b16 %v155
    %v446 = vunpack.c.l.b16 %v156
    %v447 = vunpack.c.h.b16 %v156
    %v448 = vunpack.c.l.b16 %v157
    %v449 = vunpack.c.h.b16 %v157
    %v450 = vunpack.c.l.b16 %v158
    %v451 = vunpack.c.h.b16 %v158
    %v452 = vunpack.c.l.b16 %v159
    %v453 = vunpack.c.h.b16 %v159
    %v454 = vunpack.c.l.b16 %v160
    %v455 = vunpack.c.h.b16 %v160
    %v456 = vunpack.c.l.b16 %v161
    %v457 = vunpack.c.h.b16 %v161
    %v458 = vunpack.c.l.b16 %v162
    %v459 = vunpack.c.h.b16 %v162
    %v460 = vunpack.c.l.b16 %v163
    %v461 = vunpack.c.h.b16 %v163
    %v462 = vunpack.c.l.b16 %v164
    %v463 = vunpack.c.h.b16 %v164
    %v464 = vunpack.c.l.b16 %v165
    %v465 = vunpack.c.h.b16 %v165
    %v466 = vunpack.c.l.b16 %v166
    %v467 = vunpack.c.h.b16 %v166
    %v468 = vunpack.c.l.b16 %v167
    %v469 = vunpack.c.h.b16 %v167
    %v470 = vunpack.c.l.b16 %v168
    %v471 = vunpack.c.h.b16 %v168
    %v472 = vunpack.c.l.b16 %v169
    %v473 = vunpack.c.h.b16 %v169
    %v474 = vunpack.c.l.b16 %v170
    %v475 = vunpack.c.h.b16 %v170
    %v476 = vunpack.c.l.b16 %v171
    %v477 = vunpack.c.h.b16 %v171
    %v478 = vunpack.c.l.b16 %v172
    %v479 = vunpack.c.h.b16 %v172
    %v480 = vunpack.c.l.b16 %v173
    %v481 = vunpack.c.h.b16 %v173
    %v482 = vunpack.c.l.b16 %v174
    %v483 = vunpack.c.h.b16 %v174
    %v484 = vunpack.c.l.b16 %v175
    %v485 = vunpack.c.h.b16 %v175
    %v486 = vunpack.c.l.b16 %v176
    %v487 = vunpack.c.h.b16 %v176
    %v488 = vunpack.c.l.b16 %v177
    %v489 = vunpack.c.h.b16 %v177
    %v490 = vunpack.c.l.b16 %v178
    %v491 = vunpack.c.h.b16 %v178
    %v492 = vunpack.c.l.b16 %v179
    %v493 = vunpack.c.h.b16 %v179
    %v494 = vunpack.c.l.b16 %v180
    %v495 = vunpack.c.h.b16 %v180
    %v496 = vunpack.c.l.b16 %v181
    %v497 = vunpack.c.h.b16 %v181
    %v498 = vunpack.c.l.b16 %v182
    %v499 = vunpack.c.h.b16 %v182
    %v500 = vunpack.c.l.b16 %v183
    %v501 = vunpack.c.h.b16 %v183
    %v502 = vunpack.c.l.b16 %v184
    %v503 = vunpack.c.h.b16 %v184
    %v504 = vunpack.c.l.b16 %v185
    %v505 = vunpack.c.h.b16 %v185
    %v506 = vunpack.c.l.b16 %v186
    %v507 = vunpack.c.h.b16 %v186
    %v508 = vunpack.c.l.b16 %v187
    %v509 = vunpack.c.h.b16 %v187
    %v510 = vunpack.c.l.b16 %v188
    %v511 = vunpack.c.h.b16 %v188
    %v512 = vunpack.c.l.b16 %v189
    %v513 = vunpack.c.h.b16 %v189
    %v514 = vunpack.c.l.b16 %v190
    %v515 = vunpack.c.h.b16 %v190
    %v516 = vunpack.c.l.b16 %v191
    %v517 = vunpack.c.h.b16 %v191
    %v518 = vunpack.c.l.b16 %v192
    %v519 = vunpack.c.h.b16 %v192
    %v520 = vunpack.c.l.b16 %v193
    %v521 = vunpack.c.h.b16 %v193
    %v522 = vunpack.c.l.b16 %v194
    %v523 = vunpack.c.h.b16 %v194
    %v524 = vunpack.c.l.b16 %v195
    %v525 = vunpack.c.h.b16 %v195
    %v526 = vunpack.c.l.b16 %v196
    %v527 = vunpack.c.h.b16 %v196
    %v528 = vunpack.c.l.b16 %v197
    %v529 = vunpack.c.h.b16 %v197
    %v530 = vunpack.c.l.b16 %v198
    %v531 = vunpack.c.h.b16 %v198
    %v532 = vunpack.c.l.b16 %v199
    %v533 = vunpack.c.h.b16 %v199
    %v534 = vunpack.c.l.b16 %v200
    %v535 = vunpack.c.h.b16 %v200
    %v536 = vunpack.c.l.b16 %v201
    %v537 = vunpack.c.h.b16 %v201
    %v538 = vunpack.c.l.b16 %v202
    %v539 = vunpack.c.h.b16 %v202
    %v540 = vunpack.c.l.b16 %v203
    %v541 = vunpack.c.h.b16 %v203
    %v542 = vunpack.c.l.b16 %v204
    %v543 = vunpack.c.h.b16 %v204
    %v544 = vunpack.c.l.b16 %v205
    %v545 = vunpack.c.h.b16 %v205
    %v546 = vunpack.c.l.b16 %v206
    %v547 = vunpack.c.h.b16 %v206
    %v548 = vunpack.c.l.b16 %v207
    %v549 = vunpack.c.h.b16 %v207
    %v550 = vunpack.c.l.b16 %v208
    %v551 = vunpack.c.h.b16 %v208
    %v552 = vunpack.c.l.b16 %v209
    %v553 = vunpack.c.h.b16 %v209
    %v554 = vunpack.c.l.b16 %v210
    %v555 = vunpack.c.h.b16 %v210
    %v556 = vunpack.c.l.b16 %v211
    %v557 = vunpack.c.h.b16 %v211
    %v558 = vunpack.c.l.b16 %v212
    %v559 = vunpack.c.h.b16 %v212
    %v560 = vunpack.c.l.b16 %v213
    %v561 = vunpack.c.h.b16 %v213
    %v562 = vunpack.c.l.b16 %v214
    %v563 = vunpack.c.h.b16 %v214
    %v564 = vunpack.c.l.b16 %v215
    %v565 = vunpack.c.h.b16 %v215
    %v566 = vunpack.c.l.b16 %v216
    %v567 = vunpack.c.h.b16 %v216
    %v568 = vunpack.c.l.b16 %v217
    %v569 = vunpack.c.h.b16 %v217
    %v570 = vunpack.c.l.b16 %v218
    %v571 = vunpack.c.h.b16 %v218
    %v572 = vunpack.c.l.b16 %v219
    %v573 = vunpack.c.h.b16 %v219
    %v574 = vunpack.c.l.b16 %v220
    %v575 = vunpack.c.h.b16 %v220
    %v576 = vunpack.c.l.b16 %v221
    %v577 = vunpack.c.h.b16 %v221
    %v578 = vunpack.c.l.b16 %v222
    %v579 = vunpack.c.h.b16 %v222
    %v580 = vunpack.c.l.b16 %v223
    %v581 = vunpack.c.h.b16 %v223
    %v582 = vunpack.c.l.b16 %v224
    %v583 = vunpack.c.h.b16 %v224
    %v584 = vunpack.c.l.b16 %v225
    %v585 = vunpack.c.h.b16 %v225
    %v586 = vunpack.c.l.b16 %v226
    %v587 = vunpack.c.h.b16 %v226
    %v588 = vunpack.c.l.b16 %v227
    %v589 = vunpack.c.h.b16 %v227
    %v590 = vunpack.c.l.b16 %v228
    %v591 = vunpack.c.h.b16 %v228
    %v592 = vunpack.c.l.b16 %v229
    %v593 = vunpack.c.h.b16 %v229
    %v594 = vunpack.c.l.b16 %v230
    %v595 = vunpack.c.h.b16 %v230
    %v596 = vunpack.c.l.b16 %v231
    %v597 = vunpack.c.h.b16 %v231
    %v598 = vunpack.c.l.b16 %v232
    %v599 = vunpack.c.h.b16 %v232
    %v600 = vunpack.c.l.b16 %v233
    %v601 = vunpack.c.h.b16 %v233
    %v602 = vunpack.c.l.b16 %v234
    %v603 = vunpack.c.h.b16 %v234
    %v604 = vunpack.c.l.b16 %v235
    %v605 = vunpack.c.h.b16 %v235
    %v606 = vunpack.c.l.b16 %v236
    %v607 = vunpack.c.h.b16 %v236
    %v608 = vunpack.c.l.b16 %v237
    %v609 = vunpack.c.h.b16 %v237
    %v610 = vunpack.c.l.b16 %v238
    %v611 = vunpack.c.h.b16 %v238
    %v612 = vunpack.c.l.b16 %v239
    %v613 = vunpack.c.h.b16 %v239
    %v614 = vunpack.c.l.b16 %v240
    %v615 = vunpack.c.h.b16 %v240
    %v616 = vunpack.c.l.b16 %v241
    %v617 = vunpack.c.h.b16 %v241
    %v618 = vunpack.c.l.b16 %v242
    %v619 = vunpack.c.h.b16 %v242
    %v620 = vunpack.c.l.b16 %v243
    %v621 = vunpack.c.h.b16 %v243
    %v622 = vunpack.c.l.b16 %v244
    %v623 = vunpack.c.h.b16 %v244
    %v624 = vunpack.c.l.b16 %v245
    %v625 = vunpack.c.h.b16 %v245
    %v626 = vunpack.c.l.b16 %v246
    %v627 = vunpack.c.h.b16 %v246
    %v628 = vunpack.c.l.b16 %v247
    %v629 = vunpack.c.h.b16 %v247
    %v630 = vunpack.c.l.b16 %v248
    %v631 = vunpack.c.h.b16 %v248
    %v632 = vunpack.c.l.b16 %v249
    %v633 = vunpack.c.h.b16 %v249
    %v634 = vunpack.c.l.b16 %v250
    %v635 = vunpack.c.h.b16 %v250
    %v636 = vunpack.c.l.b16 %v251
    %v637 = vunpack.c.h.b16 %v251
    %v638 = vpack.c.b16 %v390, %v388
    %v639 = vpack.c.b16 %v391, %v389
    %v640 = vpack.c.b16 %v394, %v392
    %v641 = vpack.c.b16 %v395, %v393
    %v642 = vpack.c.b16 %v398, %v396
    %v643 = vpack.c.b16 %v399, %v397
    %v644 = vpack.c.b16 %v402, %v400
    %v645 = vpack.c.b16 %v403, %v401
    %v646 = vpack.c.b16 %v406, %v404
    %v647 = vpack.c.b16 %v407, %v405
    %v648 = vpack.c.b16 %v410, %v408
    %v649 = vpack.c.b16 %v411, %v409
    %v650 = vpack.c.b16 %v414, %v412
    %v651 = vpack.c.b16 %v415, %v413
    %v652 = vpack.c.b16 %v418, %v416
    %v653 = vpack.c.b16 %v419, %v417
    %v654 = vpack.c.b16 %v422, %v420
    %v655 = vpack.c.b16 %v423, %v421
    %v656 = vpack.c.b16 %v426, %v424
    %v657 = vpack.c.b16 %v427, %v425
    %v658 = vpack.c.b16 %v430, %v428
    %v659 = vpack.c.b16 %v431, %v429
    %v660 = vpack.c.b16 %v434, %v432
    %v661 = vpack.c.b16 %v435, %v433
    %v662 = vpack.c.b16 %v438, %v436
    %v663 = vpack.c.b16 %v439, %v437
    %v664 = vpack.c.b16 %v442, %v440
    %v665 = vpack.c.b16 %v443, %v441
    %v666 = vpack.c.b16 %v446, %v444
    %v667 = vpack.c.b16 %v447, %v445
    %v668 = vpack.c.b16 %v450, %v448
    %v669 = vpack.c.b16 %v451, %v449
    %v670 = vpack.c.b16 %v454, %v452
    %v671 = vpack.c.b16 %v455, %v453
    %v672 = vpack.c.b16 %v458, %v456
    %v673 = vpack.c.b16 %v459, %v457
    %v674 = vpack.c.b16 %v462, %v460
    %v675 = vpack.c.b16 %v463, %v461
    %v676 = vpack.c.b16 %v466, %v464
    %v677 = vpack.c.b16 %v467, %v465
    %v678 = vpack.c.b16 %v470, %v468
    %v679 = vpack.c.b16 %v471, %v469
    %v680 = vpack.c.b16 %v474, %v472
    %v681 = vpack.c.b16 %v475, %v473
    %v682 = vpack.c.b16 %v478, %v476
    %v683 = vpack.c.b16 %v479, %v477
    %v684 = vpack.c.b16 %v482, %v480
    %v685 = vpack.c.b16 %v483, %v481
    %v686 = vpack.c.b16 %v486, %v484
    %v687 = vpack.c.b16 %v487, %v485
    %v688 = vpack.c.b16 %v490, %v488
    %v689 = vpack.c.b16 %v491, %v489
    %v690 = vpack.c.b16 %v494, %v492
    %v691 = vpack.c.b16 %v495, %v493
    %v692 = vpack.c.b16 %v498, %v496
    %v693 = vpack.c.b16 %v499, %v497
    %v694 = vpack.c.b16 %v502, %v500
    %v695 = vpack.c.b16 %v503, %v501
    %v696 = vpack.c.b16 %v506, %v504
    %v697 = vpack.c.b16 %v507, %v505
    %v698 = vpack.c.b16 %v510, %v508
    %v699 = vpack.c.b16 %v511, %v509
    %v700 = vpack.c.b16 %v514, %v512
    %v701 = vpack.c.b16 %v515, %v513
    %v702 = vpack.c.b16 %v518, %v516
    %v703 = vpack.c.b16 %v519, %v517
    %v704 = vpack.c.b16 %v522, %v520
    %v705 = vpack.c.b16 %v523, %v521
    %v706 = vpack.c.b16 %v526, %v524
    %v707 = vpack.c.b16 %v527, %v525
    %v708 = vpack.c.b16 %v530, %v528
    %v709 = vpack.c.b16 %v531, %v529
    %v710 = vpack.c.b16 %v534, %v532
    %v711 = vpack.c.b16 %v535, %v533
    %v712 = vpack.c.b16 %v538, %v536
    %v713 = vpack.c.b16 %v539, %v537
    %v714 = vpack.c.b16 %v542, %v540
    %v715 = vpack.c.b16 %v543, %v541
    %v716 = vpack.c.b16 %v546, %v544
    %v717 = vpack.c.b16 %v547, %v545
    %v718 = vpack.c.b16 %v550, %v548
    %v719 = vpack.c.b16 %v551, %v549
    %v720 = vpack.c.b16 %v554, %v552
    %v721 = vpack.c.b16 %v555, %v553
    %v722 = vpack.c.b16 %v558, %v556
    %v723 = vpack.c.b16 %v559, %v557
    %v724 = vpack.c.b16 %v562, %v560
    %v725 = vpack.c.b16 %v563, %v561
    %v726 = vpack.c.b16 %v566, %v564
    %v727 = vpack.c.b16 %v567, %v565
    %v728 = vpack.c.b16 %v570, %v568
    %v729 = vpack.c.b16 %v571, %v569
    %v730 = vpack.c.b16 %v574, %v572
    %v731 = vpack.c.b16 %v575, %v573
    %v732 = vpack.c.b16 %v578, %v576
    %v733 = vpack.c.b16 %v579, %v577
    %v734 = vpack.c.b16 %v582, %v580
    %v735 = vpack.c.b16 %v583, %v581
    %v736 = vpack.c.b16 %v586, %v584
    %v737 = vpack.c.b16 %v587, %v585
    %v738 = vpack.c.b16 %v590, %v588
    %v739 = vpack.c.b16 %v591, %v589
    %v740 = vpack.c.b16 %v594, %v592
    %v741 = vpack.c.b16 %v595, %v593
    %v742 = vpack.c.b16 %v598, %v596
    %v743 = vpack.c.b16 %v599, %v597
    %v744 = vpack.c.b16 %v602, %v600
    %v745 = vpack.c.b16 %v603, %v601
    %v746 = vpack.c.b16 %v606, %v604
    %v747 = vpack.c.b16 %v607, %v605
    %v748 = vpack.c.b16 %v610, %v608
    %v749 = vpack.c.b16 %v611, %v609
    %v750 = vpack.c.b16 %v614, %v612
    %v751 = vpack.c.b16 %v615, %v613
    %v752 = vpack.c.b16 %v618, %v616
    %v753 = vpack.c.b16 %v619, %v617
    %v754 = vpack.c.b16 %v622, %v620
    %v755 = vpack.c.b16 %v623, %v621
    %v756 = vpack.c.b16 %v626, %v624
    %v757 = vpack.c.b16 %v627, %v625
    %v758 = vpack.c.b16 %v630, %v628
    %v759 = vpack.c.b16 %v631, %v629
    %v760 = vpack.c.b16 %v634, %v632
    %v761 = vpack.c.b16 %v635, %v633
    %v762 = vpack.c.b16 %v636, %v636
    %v763 = vpack.c.b16 %v637, %v637
    %vm888 = vcmask 850944
    %v890 = vsel %vm888, %v97, 0
    %vm892 = vcmask 1043456
    %v894 = vsel %vm892, %v762, 0
    %v897 = vsel %vm892, %v763, 0
    %899 = vmatprep.subr.bf16.mxu0 %v639
    %900 = vmatpush1.bf16.msra.mxu0 %v638
    %901 = vmatprep.subr.bf16.mxu0 %v641
    %902 = vmatpush1.bf16.msra.mxu0 %v640
    %903 = vmatprep.subr.bf16.mxu0 %v643
    %904 = vmatpush1.bf16.msra.mxu0 %v642
    %905 = vmatprep.subr.bf16.mxu0 %v645
    %906 = vmatpush1.bf16.msra.mxu0 %v644
    %907 = vmatprep.subr.bf16.mxu0 %v647
    %908 = vmatpush1.bf16.msra.mxu0 %v646
    %909 = vmatprep.subr.bf16.mxu0 %v649
    %910 = vmatpush1.bf16.msra.mxu0 %v648
    %911 = vmatprep.subr.bf16.mxu0 %v651
    %912 = vmatpush1.bf16.msra.mxu0 %v650
    %913 = vmatprep.subr.bf16.mxu0 %v653
    %914 = vmatpush1.bf16.msra.mxu0 %v652
    %915 = vmatprep.subr.bf16.mxu0 %v655
    %916 = vmatpush1.bf16.msra.mxu0 %v654
    %917 = vmatprep.subr.bf16.mxu0 %v657
    %918 = vmatpush1.bf16.msra.mxu0 %v656
    %919 = vmatprep.subr.bf16.mxu0 %v659
    %920 = vmatpush1.bf16.msra.mxu0 %v658
    %921 = vmatprep.subr.bf16.mxu0 %v661
    %922 = vmatpush1.bf16.msra.mxu0 %v660
    %923 = vmatprep.subr.bf16.mxu0 %v663
    %924 = vmatpush1.bf16.msra.mxu0 %v662
    %925 = vmatprep.subr.bf16.mxu0 %v665
    %926 = vmatpush1.bf16.msra.mxu0 %v664
    %927 = vmatprep.subr.bf16.mxu0 %v667
    %928 = vmatpush1.bf16.msra.mxu0 %v666
    %929 = vmatprep.subr.bf16.mxu0 %v669
    %930 = vmatpush1.bf16.msra.mxu0 %v668
    %931 = vmatprep.mubr.bf16.mxu0 %v91
    %932 = vmatmul.mubr.bf16.gmra.mrb[0].mxu0 %v90
    %v933 = vpop.f32.mrb[0].mxu0
    %v934 = vadd.f32 %v256, %v933
    %v935 = vpop.f32.mrb[0].mxu0
    %v936 = vadd.f32 %v260, %v935
    %v937 = vpop.f32.mrb[0].mxu0
    %v938 = vadd.f32 %v256, %v937
    %v939 = vpop.f32.mrb[0].mxu0
    %v940 = vadd.f32 %v260, %v939
    %941 = vdwg.mxu0
    %942 = vmatprep.subr.bf16.mxu0 %v671
    %943 = vmatpush1.bf16.msra.mxu0 %v670
    %944 = vmatprep.subr.bf16.mxu0 %v673
    %945 = vmatpush1.bf16.msra.mxu0 %v672
    %946 = vmatprep.subr.bf16.mxu0 %v675
    %947 = vmatpush1.bf16.msra.mxu0 %v674
    %948 = vmatprep.subr.bf16.mxu0 %v677
    %949 = vmatpush1.bf16.msra.mxu0 %v676
    %950 = vmatprep.subr.bf16.mxu0 %v679
    %951 = vmatpush1.bf16.msra.mxu0 %v678
    %952 = vmatprep.subr.bf16.mxu0 %v681
    %953 = vmatpush1.bf16.msra.mxu0 %v680
    %954 = vmatprep.subr.bf16.mxu0 %v683
    %955 = vmatpush1.bf16.msra.mxu0 %v682
    %956 = vmatprep.subr.bf16.mxu0 %v685
    %957 = vmatpush1.bf16.msra.mxu0 %v684
    %958 = vmatprep.subr.bf16.mxu0 %v687
    %959 = vmatpush1.bf16.msra.mxu0 %v686
    %960 = vmatprep.subr.bf16.mxu0 %v689
    %961 = vmatpush1.bf16.msra.mxu0 %v688
    %962 = vmatprep.subr.bf16.mxu0 %v691
    %963 = vmatpush1.bf16.msra.mxu0 %v690
    %964 = vmatprep.subr.bf16.mxu0 %v693
    %965 = vmatpush1.bf16.msra.mxu0 %v692
    %966 = vmatprep.subr.bf16.mxu0 %v695
    %967 = vmatpush1.bf16.msra.mxu0 %v694
    %968 = vmatprep.subr.bf16.mxu0 %v697
    %969 = vmatpush1.bf16.msra.mxu0 %v696
    %970 = vmatprep.subr.bf16.mxu0 %v699
    %971 = vmatpush1.bf16.msra.mxu0 %v698
    %972 = vmatprep.subr.bf16.mxu0 %v701
    %973 = vmatpush1.bf16.msra.mxu0 %v700
    %974 = vmatprep.mubr.bf16.mxu0 %v93
    %975 = vmatmul.mubr.bf16.gmra.mrb[0].mxu0 %v92
    %v976 = vpop.f32.mrb[0].mxu0
    %v977 = vadd.f32 %v934, %v976
    %v978 = vpop.f32.mrb[0].mxu0
    %v979 = vadd.f32 %v936, %v978
    %v980 = vpop.f32.mrb[0].mxu0
    %v981 = vadd.f32 %v938, %v980
    %v982 = vpop.f32.mrb[0].mxu0
    %v983 = vadd.f32 %v940, %v982
    %984 = vdwg.mxu0
    %985 = vmatprep.subr.bf16.mxu0 %v703
    %986 = vmatpush1.bf16.msra.mxu0 %v702
    %987 = vmatprep.subr.bf16.mxu0 %v705
    %988 = vmatpush1.bf16.msra.mxu0 %v704
    %989 = vmatprep.subr.bf16.mxu0 %v707
    %990 = vmatpush1.bf16.msra.mxu0 %v706
    %991 = vmatprep.subr.bf16.mxu0 %v709
    %992 = vmatpush1.bf16.msra.mxu0 %v708
    %993 = vmatprep.subr.bf16.mxu0 %v711
    %994 = vmatpush1.bf16.msra.mxu0 %v710
    %995 = vmatprep.subr.bf16.mxu0 %v713
    %996 = vmatpush1.bf16.msra.mxu0 %v712
    %997 = vmatprep.subr.bf16.mxu0 %v715
    %998 = vmatpush1.bf16.msra.mxu0 %v714
    %999 = vmatprep.subr.bf16.mxu0 %v717
    %1000 = vmatpush1.bf16.msra.mxu0 %v716
    %1001 = vmatprep.subr.bf16.mxu0 %v719
    %1002 = vmatpush1.bf16.msra.mxu0 %v718
    %1003 = vmatprep.subr.bf16.mxu0 %v721
    %1004 = vmatpush1.bf16.msra.mxu0 %v720
    %1005 = vmatprep.subr.bf16.mxu0 %v723
    %1006 = vmatpush1.bf16.msra.mxu0 %v722
    %1007 = vmatprep.subr.bf16.mxu0 %v725
    %1008 = vmatpush1.bf16.msra.mxu0 %v724
    %1009 = vmatprep.subr.bf16.mxu0 %v727
    %1010 = vmatpush1.bf16.msra.mxu0 %v726
    %1011 = vmatprep.subr.bf16.mxu0 %v729
    %1012 = vmatpush1.bf16.msra.mxu0 %v728
    %1013 = vmatprep.subr.bf16.mxu0 %v731
    %1014 = vmatpush1.bf16.msra.mxu0 %v730
    %1015 = vmatprep.subr.bf16.mxu0 %v733
    %1016 = vmatpush1.bf16.msra.mxu0 %v732
    %1017 = vmatprep.mubr.bf16.mxu0 %v95
    %1018 = vmatmul.mubr.bf16.gmra.mrb[0].mxu0 %v94
    %v1019 = vpop.f32.mrb[0].mxu0
    %v1020 = vadd.f32 %v977, %v1019
    %v1021 = vpop.f32.mrb[0].mxu0
    %v1022 = vadd.f32 %v979, %v1021
    %v1023 = vpop.f32.mrb[0].mxu0
    %v1024 = vadd.f32 %v981, %v1023
    %v1025 = vpop.f32.mrb[0].mxu0
    %v1026 = vadd.f32 %v983, %v1025
    %1027 = vdwg.mxu0
    %1028 = vmatprep.subr.bf16.mxu0 %v735
    %1029 = vmatpush1.bf16.msra.mxu0 %v734
    %1030 = vmatprep.subr.bf16.mxu0 %v737
    %1031 = vmatpush1.bf16.msra.mxu0 %v736
    %1032 = vmatprep.subr.bf16.mxu0 %v739
    %1033 = vmatpush1.bf16.msra.mxu0 %v738
    %1034 = vmatprep.subr.bf16.mxu0 %v741
    %1035 = vmatpush1.bf16.msra.mxu0 %v740
    %1036 = vmatprep.subr.bf16.mxu0 %v743
    %1037 = vmatpush1.bf16.msra.mxu0 %v742
    %1038 = vmatprep.subr.bf16.mxu0 %v745
    %1039 = vmatpush1.bf16.msra.mxu0 %v744
    %1040 = vmatprep.subr.bf16.mxu0 %v747
    %1041 = vmatpush1.bf16.msra.mxu0 %v746
    %1042 = vmatprep.subr.bf16.mxu0 %v749
    %1043 = vmatpush1.bf16.msra.mxu0 %v748
    %1044 = vmatprep.subr.bf16.mxu0 %v751
    %1045 = vmatpush1.bf16.msra.mxu0 %v750
    %1046 = vmatprep.subr.bf16.mxu0 %v753
    %1047 = vmatpush1.bf16.msra.mxu0 %v752
    %1048 = vmatprep.subr.bf16.mxu0 %v755
    %1049 = vmatpush1.bf16.msra.mxu0 %v754
    %1050 = vmatprep.subr.bf16.mxu0 %v757
    %1051 = vmatpush1.bf16.msra.mxu0 %v756
    %1052 = vmatprep.subr.bf16.mxu0 %v759
    %1053 = vmatpush1.bf16.msra.mxu0 %v758
    %1054 = vmatprep.subr.bf16.mxu0 %v761
    %1055 = vmatpush1.bf16.msra.mxu0 %v760
    %1056 = vmatprep.subr.bf16.mxu0 %v897
    %1057 = vmatpush1.bf16.msra.mxu0 %v894
    %1058 = vmatprep.subr.bf16.mxu0 0
    %1059 = vmatpush1.bf16.msra.mxu0 0
    %1060 = vmatprep.mubr.bf16.mxu0 %v890
    %1061 = vmatmul.mubr.bf16.gmra.mrb[0].mxu0 %v96
    %v1062 = vpop.f32.mrb[0].mxu0
    %v1063 = vadd.f32 %v1020, %v1062
    %v1064 = vpop.f32.mrb[0].mxu0
    %v1065 = vadd.f32 %v1022, %v1064
    %v1066 = vpop.f32.mrb[0].mxu0
    %v1067 = vadd.f32 %v1024, %v1066
    %v1068 = vpop.f32.mrb[0].mxu0
    %v1069 = vadd.f32 %v1026, %v1068
    %1070 = vdwg.mxu0
    %v1071 = vmax.f32 %v1063, 0.0
    %v1072 = vmax.f32 %v1067, 0.0
    %v1073 = vxor.u32 %v1065, 2147483648
    %v1074 = vxor.u32 %v1069, 2147483648
    %v1075 = vmul.f32 %v1073, 1.442695
    %v1076 = vpow.pop %v1075
    %v1077 = vmul.f32 %v1074, 1.442695
    %v1078 = vpow.pop %v1077
    %v1079 = vadd.f32 %v1076, 1.0
    %v1080 = vadd.f32 %v1078, 1.0
    %v1081 = vrcp.pop %v1079
    %v1082 = vmul.f32 1.0, %v1081
    %v1083 = vrcp.pop %v1080
    %v1084 = vmul.f32 1.0, %v1083
    %v1085 = vld [vmem:[#allocation4] sm:$0xff]
    %v1086 = vld [vmem:[#allocation4 + $0x8] sm:$0xff]
    %v1087 = vld [vmem:[#allocation4 + $0x10] sm:$0xff]
    %v1088 = vld [vmem:[#allocation4 + $0x18] sm:$0xff]
    %v1089 = vld [vmem:[#allocation4 + $0x20] sm:$0xff]
    %v1090 = vld [vmem:[#allocation4 + $0x28] sm:$0xff]
    %v1091 = vld [vmem:[#allocation4 + $0x30] sm:$0xff]
    %v1092 = vld [vmem:[#allocation4 + $0x38] sm:$0xff]
    %v1093 = vld [vmem:[#allocation4 + $0x40] sm:$0xff]
    %v1094 = vld [vmem:[#allocation4 + $0x48] sm:$0xff]
    %v1095 = vld [vmem:[#allocation4 + $0x50] sm:$0xff]
    %v1096 = vld [vmem:[#allocation4 + $0x58] sm:$0xff]
    %v1097 = vld [vmem:[#allocation4 + $0x60] sm:$0xff]
    %v1098 = vld [vmem:[#allocation4 + $0x68] sm:$0xff]
    %v1099 = vld [vmem:[#allocation4 + $0x70] sm:$0xff]
    %v1100 = vld [vmem:[#allocation4 + $0x78] sm:$0xff]
    %v1101 = vld [vmem:[#allocation4 + $0x80] sm:$0xff]
    %v1102 = vld [vmem:[#allocation4 + $0x88] sm:$0xff]
    %v1103 = vld [vmem:[#allocation4 + $0x90] sm:$0xff]
    %v1104 = vld [vmem:[#allocation4 + $0x98] sm:$0xff]
    %v1105 = vld [vmem:[#allocation4 + $0xa0] sm:$0xff]
    %v1106 = vld [vmem:[#allocation4 + $0xa8] sm:$0xff]
    %v1107 = vld [vmem:[#allocation4 + $0xb0] sm:$0xff]
    %v1108 = vld [vmem:[#allocation4 + $0xb8] sm:$0xff]
    %v1109 = vld [vmem:[#allocation4 + $0xc0] sm:$0xff]
    %v1110 = vld [vmem:[#allocation4 + $0xc8] sm:$0xff]
    %v1111 = vld [vmem:[#allocation4 + $0xd0] sm:$0xff]
    %v1112 = vld [vmem:[#allocation4 + $0xd8] sm:$0xff]
    %v1113 = vld [vmem:[#allocation4 + $0xe0] sm:$0xff]
    %v1114 = vld [vmem:[#allocation4 + $0xe8] sm:$0xff]
    %v1115 = vld [vmem:[#allocation4 + $0xf0] sm:$0xff]
    %v1116 = vld [vmem:[#allocation4 + $0xf8] sm:$0xff]
    %v1117 = vld [vmem:[#allocation4 + $0x100] sm:$0xff]
    %v1118 = vld [vmem:[#allocation4 + $0x108] sm:$0xff]
    %v1119 = vld [vmem:[#allocation4 + $0x110] sm:$0xff]
    %v1120 = vld [vmem:[#allocation4 + $0x118] sm:$0xff]
    %v1121 = vld [vmem:[#allocation4 + $0x120] sm:$0xff]
    %v1122 = vld [vmem:[#allocation4 + $0x128] sm:$0xff]
    %v1123 = vld [vmem:[#allocation4 + $0x130] sm:$0xff]
    %v1124 = vld [vmem:[#allocation4 + $0x138] sm:$0xff]
    %v1125 = vld [vmem:[#allocation4 + $0x140] sm:$0xff]
    %v1126 = vld [vmem:[#allocation4 + $0x148] sm:$0xff]
    %v1127 = vld [vmem:[#allocation4 + $0x150] sm:$0xff]
    %v1128 = vld [vmem:[#allocation4 + $0x158] sm:$0xff]
    %v1129 = vld [vmem:[#allocation4 + $0x160] sm:$0xff]
    %v1130 = vld [vmem:[#allocation4 + $0x168] sm:$0xff]
    %v1131 = vld [vmem:[#allocation4 + $0x170] sm:$0xff]
    %v1132 = vld [vmem:[#allocation4 + $0x178] sm:$0xff]
    %v1133 = vld [vmem:[#allocation4 + $0x180] sm:$0xff]
    %v1134 = vld [vmem:[#allocation4 + $0x188] sm:$0xff]
    %v1135 = vld [vmem:[#allocation4 + $0x190] sm:$0xff]
    %v1136 = vld [vmem:[#allocation4 + $0x198] sm:$0xff]
    %v1137 = vld [vmem:[#allocation4 + $0x1a0] sm:$0xff]
    %v1138 = vld [vmem:[#allocation4 + $0x1a8] sm:$0xff]
    %v1139 = vld [vmem:[#allocation4 + $0x1b0] sm:$0xff]
    %v1140 = vld [vmem:[#allocation4 + $0x1b8] sm:$0xff]
    %v1141 = vld [vmem:[#allocation4 + $0x1c0] sm:$0xff]
    %v1142 = vld [vmem:[#allocation4 + $0x1c8] sm:$0xff]
    %v1143 = vld [vmem:[#allocation4 + $0x1d0] sm:$0xff]
    %v1144 = vld [vmem:[#allocation4 + $0x1d8] sm:$0xff]
    %v1145 = vld [vmem:[#allocation4 + $0x1e0] sm:$0xff]
    %v1146 = vld [vmem:[#allocation4 + $0x1e8] sm:$0xff]
    %v1147 = vld [vmem:[#allocation4 + $0x1f0] sm:$0xff]
    %v1148 = vld [vmem:[#allocation4 + $0x1f8] sm:$0xff]
    %v1149 = vld [vmem:[#allocation4 + $0x200] sm:$0xff]
    %v1150 = vld [vmem:[#allocation4 + $0x208] sm:$0xff]
    %v1151 = vld [vmem:[#allocation4 + $0x210] sm:$0xff]
    %v1152 = vld [vmem:[#allocation4 + $0x218] sm:$0xff]
    %v1153 = vld [vmem:[#allocation4 + $0x220] sm:$0xff]
    %v1154 = vld [vmem:[#allocation4 + $0x228] sm:$0xff]
    %v1155 = vld [vmem:[#allocation4 + $0x230] sm:$0xff]
    %v1156 = vld [vmem:[#allocation4 + $0x238] sm:$0xff]
    %v1157 = vld [vmem:[#allocation4 + $0x240] sm:$0xff]
    %v1158 = vld [vmem:[#allocation4 + $0x248] sm:$0xff]
    %v1159 = vld [vmem:[#allocation4 + $0x250] sm:$0xff]
    %v1160 = vld [vmem:[#allocation4 + $0x258] sm:$0xff]
    %v1161 = vld [vmem:[#allocation4 + $0x260] sm:$0xff]
    %v1162 = vld [vmem:[#allocation4 + $0x268] sm:$0xff]
    %v1163 = vld [vmem:[#allocation4 + $0x270] sm:$0xff]
    %v1164 = vld [vmem:[#allocation4 + $0x278] sm:$0xff]
    %v1165 = vld [vmem:[#allocation4 + $0x280] sm:$0xff]
    %v1166 = vld [vmem:[#allocation4 + $0x288] sm:$0xff]
    %v1167 = vld [vmem:[#allocation4 + $0x290] sm:$0xff]
    %v1168 = vld [vmem:[#allocation4 + $0x298] sm:$0xff]
    %v1169 = vld [vmem:[#allocation4 + $0x2a0] sm:$0xff]
    %v1170 = vld [vmem:[#allocation4 + $0x2a8] sm:$0xff]
    %v1171 = vld [vmem:[#allocation4 + $0x2b0] sm:$0xff]
    %v1172 = vld [vmem:[#allocation4 + $0x2b8] sm:$0xff]
    %v1173 = vld [vmem:[#allocation4 + $0x2c0] sm:$0xff]
    %v1174 = vld [vmem:[#allocation4 + $0x2c8] sm:$0xff]
    %v1175 = vld [vmem:[#allocation4 + $0x2d0] sm:$0xff]
    %v1176 = vld [vmem:[#allocation4 + $0x2d8] sm:$0xff]
    %v1177 = vld [vmem:[#allocation4 + $0x2e0] sm:$0xff]
    %v1178 = vld [vmem:[#allocation4 + $0x2e8] sm:$0xff]
    %v1179 = vld [vmem:[#allocation4 + $0x2f0] sm:$0xff]
    %v1180 = vld [vmem:[#allocation4 + $0x2f8] sm:$0xff]
    %v1182 = vlaneseq
    %v1183 = vshrl.u32 %v1182, 7
    %v1184 = vsub.s32 0, %v1183
    %v1185 = vrot.slane %v123, %v1184
    %v1186 = vlaneseq
    %v1187 = vshrl.u32 %v1186, 7
    %v1188 = vsub.s32 1, %v1187
    %v1189 = vrot.slane %v123, %v1188
    %v1288 = vunpack.c.l.b16 %v1085
    %v1289 = vunpack.c.h.b16 %v1085
    %v1290 = vunpack.c.l.b16 %v1086
    %v1291 = vunpack.c.h.b16 %v1086
    %v1292 = vunpack.c.l.b16 %v1087
    %v1293 = vunpack.c.h.b16 %v1087
    %v1294 = vunpack.c.l.b16 %v1088
    %v1295 = vunpack.c.h.b16 %v1088
    %v1296 = vunpack.c.l.b16 %v1089
    %v1297 = vunpack.c.h.b16 %v1089
    %v1298 = vunpack.c.l.b16 %v1090
    %v1299 = vunpack.c.h.b16 %v1090
    %v1300 = vunpack.c.l.b16 %v1091
    %v1301 = vunpack.c.h.b16 %v1091
    %v1302 = vunpack.c.l.b16 %v1092
    %v1303 = vunpack.c.h.b16 %v1092
    %v1304 = vunpack.c.l.b16 %v1093
    %v1305 = vunpack.c.h.b16 %v1093
    %v1306 = vunpack.c.l.b16 %v1094
    %v1307 = vunpack.c.h.b16 %v1094
    %v1308 = vunpack.c.l.b16 %v1095
    %v1309 = vunpack.c.h.b16 %v1095
    %v1310 = vunpack.c.l.b16 %v1096
    %v1311 = vunpack.c.h.b16 %v1096
    %v1312 = vunpack.c.l.b16 %v1097
    %v1313 = vunpack.c.h.b16 %v1097
    %v1314 = vunpack.c.l.b16 %v1098
    %v1315 = vunpack.c.h.b16 %v1098
    %v1316 = vunpack.c.l.b16 %v1099
    %v1317 = vunpack.c.h.b16 %v1099
    %v1318 = vunpack.c.l.b16 %v1100
    %v1319 = vunpack.c.h.b16 %v1100
    %v1320 = vunpack.c.l.b16 %v1101
    %v1321 = vunpack.c.h.b16 %v1101
    %v1322 = vunpack.c.l.b16 %v1102
    %v1323 = vunpack.c.h.b16 %v1102
    %v1324 = vunpack.c.l.b16 %v1103
    %v1325 = vunpack.c.h.b16 %v1103
    %v1326 = vunpack.c.l.b16 %v1104
    %v1327 = vunpack.c.h.b16 %v1104
    %v1328 = vunpack.c.l.b16 %v1105
    %v1329 = vunpack.c.h.b16 %v1105
    %v1330 = vunpack.c.l.b16 %v1106
    %v1331 = vunpack.c.h.b16 %v1106
    %v1332 = vunpack.c.l.b16 %v1107
    %v1333 = vunpack.c.h.b16 %v1107
    %v1334 = vunpack.c.l.b16 %v1108
    %v1335 = vunpack.c.h.b16 %v1108
    %v1336 = vunpack.c.l.b16 %v1109
    %v1337 = vunpack.c.h.b16 %v1109
    %v1338 = vunpack.c.l.b16 %v1110
    %v1339 = vunpack.c.h.b16 %v1110
    %v1340 = vunpack.c.l.b16 %v1111
    %v1341 = vunpack.c.h.b16 %v1111
    %v1342 = vunpack.c.l.b16 %v1112
    %v1343 = vunpack.c.h.b16 %v1112
    %v1344 = vunpack.c.l.b16 %v1113
    %v1345 = vunpack.c.h.b16 %v1113
    %v1346 = vunpack.c.l.b16 %v1114
    %v1347 = vunpack.c.h.b16 %v1114
    %v1348 = vunpack.c.l.b16 %v1115
    %v1349 = vunpack.c.h.b16 %v1115
    %v1350 = vunpack.c.l.b16 %v1116
    %v1351 = vunpack.c.h.b16 %v1116
    %v1352 = vunpack.c.l.b16 %v1117
    %v1353 = vunpack.c.h.b16 %v1117
    %v1354 = vunpack.c.l.b16 %v1118
    %v1355 = vunpack.c.h.b16 %v1118
    %v1356 = vunpack.c.l.b16 %v1119
    %v1357 = vunpack.c.h.b16 %v1119
    %v1358 = vunpack.c.l.b16 %v1120
    %v1359 = vunpack.c.h.b16 %v1120
    %v1360 = vunpack.c.l.b16 %v1121
    %v1361 = vunpack.c.h.b16 %v1121
    %v1362 = vunpack.c.l.b16 %v1122
    %v1363 = vunpack.c.h.b16 %v1122
    %v1364 = vunpack.c.l.b16 %v1123
    %v1365 = vunpack.c.h.b16 %v1123
    %v1366 = vunpack.c.l.b16 %v1124
    %v1367 = vunpack.c.h.b16 %v1124
    %v1368 = vunpack.c.l.b16 %v1125
    %v1369 = vunpack.c.h.b16 %v1125
    %v1370 = vunpack.c.l.b16 %v1126
    %v1371 = vunpack.c.h.b16 %v1126
    %v1372 = vunpack.c.l.b16 %v1127
    %v1373 = vunpack.c.h.b16 %v1127
    %v1374 = vunpack.c.l.b16 %v1128
    %v1375 = vunpack.c.h.b16 %v1128
    %v1376 = vunpack.c.l.b16 %v1129
    %v1377 = vunpack.c.h.b16 %v1129
    %v1378 = vunpack.c.l.b16 %v1130
    %v1379 = vunpack.c.h.b16 %v1130
    %v1380 = vunpack.c.l.b16 %v1131
    %v1381 = vunpack.c.h.b16 %v1131
    %v1382 = vunpack.c.l.b16 %v1132
    %v1383 = vunpack.c.h.b16 %v1132
    %v1384 = vunpack.c.l.b16 %v1133
    %v1385 = vunpack.c.h.b16 %v1133
    %v1386 = vunpack.c.l.b16 %v1134
    %v1387 = vunpack.c.h.b16 %v1134
    %v1388 = vunpack.c.l.b16 %v1135
    %v1389 = vunpack.c.h.b16 %v1135
    %v1390 = vunpack.c.l.b16 %v1136
    %v1391 = vunpack.c.h.b16 %v1136
    %v1392 = vunpack.c.l.b16 %v1137
    %v1393 = vunpack.c.h.b16 %v1137
    %v1394 = vunpack.c.l.b16 %v1138
    %v1395 = vunpack.c.h.b16 %v1138
    %v1396 = vunpack.c.l.b16 %v1139
    %v1397 = vunpack.c.h.b16 %v1139
    %v1398 = vunpack.c.l.b16 %v1140
    %v1399 = vunpack.c.h.b16 %v1140
    %v1400 = vunpack.c.l.b16 %v1141
    %v1401 = vunpack.c.h.b16 %v1141
    %v1402 = vunpack.c.l.b16 %v1142
    %v1403 = vunpack.c.h.b16 %v1142
    %v1404 = vunpack.c.l.b16 %v1143
    %v1405 = vunpack.c.h.b16 %v1143
    %v1406 = vunpack.c.l.b16 %v1144
    %v1407 = vunpack.c.h.b16 %v1144
    %v1408 = vunpack.c.l.b16 %v1145
    %v1409 = vunpack.c.h.b16 %v1145
    %v1410 = vunpack.c.l.b16 %v1146
    %v1411 = vunpack.c.h.b16 %v1146
    %v1412 = vunpack.c.l.b16 %v1147
    %v1413 = vunpack.c.h.b16 %v1147
    %v1414 = vunpack.c.l.b16 %v1148
    %v1415 = vunpack.c.h.b16 %v1148
    %v1416 = vunpack.c.l.b16 %v1149
    %v1417 = vunpack.c.h.b16 %v1149
    %v1418 = vunpack.c.l.b16 %v1150
    %v1419 = vunpack.c.h.b16 %v1150
    %v1420 = vunpack.c.l.b16 %v1151
    %v1421 = vunpack.c.h.b16 %v1151
    %v1422 = vunpack.c.l.b16 %v1152
    %v1423 = vunpack.c.h.b16 %v1152
    %v1424 = vunpack.c.l.b16 %v1153
    %v1425 = vunpack.c.h.b16 %v1153
    %v1426 = vunpack.c.l.b16 %v1154
    %v1427 = vunpack.c.h.b16 %v1154
    %v1428 = vunpack.c.l.b16 %v1155
    %v1429 = vunpack.c.h.b16 %v1155
    %v1430 = vunpack.c.l.b16 %v1156
    %v1431 = vunpack.c.h.b16 %v1156
    %v1432 = vunpack.c.l.b16 %v1157
    %v1433 = vunpack.c.h.b16 %v1157
    %v1434 = vunpack.c.l.b16 %v1158
    %v1435 = vunpack.c.h.b16 %v1158
    %v1436 = vunpack.c.l.b16 %v1159
    %v1437 = vunpack.c.h.b16 %v1159
    %v1438 = vunpack.c.l.b16 %v1160
    %v1439 = vunpack.c.h.b16 %v1160
    %v1440 = vunpack.c.l.b16 %v1161
    %v1441 = vunpack.c.h.b16 %v1161
    %v1442 = vunpack.c.l.b16 %v1162
    %v1443 = vunpack.c.h.b16 %v1162
    %v1444 = vunpack.c.l.b16 %v1163
    %v1445 = vunpack.c.h.b16 %v1163
    %v1446 = vunpack.c.l.b16 %v1164
    %v1447 = vunpack.c.h.b16 %v1164
    %v1448 = vunpack.c.l.b16 %v1165
    %v1449 = vunpack.c.h.b16 %v1165
    %v1450 = vunpack.c.l.b16 %v1166
    %v1451 = vunpack.c.h.b16 %v1166
    %v1452 = vunpack.c.l.b16 %v1167
    %v1453 = vunpack.c.h.b16 %v1167
    %v1454 = vunpack.c.l.b16 %v1168
    %v1455 = vunpack.c.h.b16 %v1168
    %v1456 = vunpack.c.l.b16 %v1169
    %v1457 = vunpack.c.h.b16 %v1169
    %v1458 = vunpack.c.l.b16 %v1170
    %v1459 = vunpack.c.h.b16 %v1170
    %v1460 = vunpack.c.l.b16 %v1171
    %v1461 = vunpack.c.h.b16 %v1171
    %v1462 = vunpack.c.l.b16 %v1172
    %v1463 = vunpack.c.h.b16 %v1172
    %v1464 = vunpack.c.l.b16 %v1173
    %v1465 = vunpack.c.h.b16 %v1173
    %v1466 = vunpack.c.l.b16 %v1174
    %v1467 = vunpack.c.h.b16 %v1174
    %v1468 = vunpack.c.l.b16 %v1175
    %v1469 = vunpack.c.h.b16 %v1175
    %v1470 = vunpack.c.l.b16 %v1176
    %v1471 = vunpack.c.h.b16 %v1176
    %v1472 = vunpack.c.l.b16 %v1177
    %v1473 = vunpack.c.h.b16 %v1177
    %v1474 = vunpack.c.l.b16 %v1178
    %v1475 = vunpack.c.h.b16 %v1178
    %v1476 = vunpack.c.l.b16 %v1179
    %v1477 = vunpack.c.h.b16 %v1179
    %v1478 = vunpack.c.l.b16 %v1180
    %v1479 = vunpack.c.h.b16 %v1180
    %v1480 = vpack.c.b16 %v1290, %v1288
    %v1481 = vpack.c.b16 %v1291, %v1289
    %v1482 = vpack.c.b16 %v1294, %v1292
    %v1483 = vpack.c.b16 %v1295, %v1293
    %v1484 = vpack.c.b16 %v1298, %v1296
    %v1485 = vpack.c.b16 %v1299, %v1297
    %v1486 = vpack.c.b16 %v1302, %v1300
    %v1487 = vpack.c.b16 %v1303, %v1301
    %v1488 = vpack.c.b16 %v1306, %v1304
    %v1489 = vpack.c.b16 %v1307, %v1305
    %v1490 = vpack.c.b16 %v1310, %v1308
    %v1491 = vpack.c.b16 %v1311, %v1309
    %v1492 = vpack.c.b16 %v1314, %v1312
    %v1493 = vpack.c.b16 %v1315, %v1313
    %v1494 = vpack.c.b16 %v1318, %v1316
    %v1495 = vpack.c.b16 %v1319, %v1317
    %v1496 = vpack.c.b16 %v1322, %v1320
    %v1497 = vpack.c.b16 %v1323, %v1321
    %v1498 = vpack.c.b16 %v1326, %v1324
    %v1499 = vpack.c.b16 %v1327, %v1325
    %v1500 = vpack.c.b16 %v1330, %v1328
    %v1501 = vpack.c.b16 %v1331, %v1329
    %v1502 = vpack.c.b16 %v1334, %v1332
    %v1503 = vpack.c.b16 %v1335, %v1333
    %v1504 = vpack.c.b16 %v1338, %v1336
    %v1505 = vpack.c.b16 %v1339, %v1337
    %v1506 = vpack.c.b16 %v1342, %v1340
    %v1507 = vpack.c.b16 %v1343, %v1341
    %v1508 = vpack.c.b16 %v1346, %v1344
    %v1509 = vpack.c.b16 %v1347, %v1345
    %v1510 = vpack.c.b16 %v1350, %v1348
    %v1511 = vpack.c.b16 %v1351, %v1349
    %v1512 = vpack.c.b16 %v1354, %v1352
    %v1513 = vpack.c.b16 %v1355, %v1353
    %v1514 = vpack.c.b16 %v1358, %v1356
    %v1515 = vpack.c.b16 %v1359, %v1357
    %v1516 = vpack.c.b16 %v1362, %v1360
    %v1517 = vpack.c.b16 %v1363, %v1361
    %v1518 = vpack.c.b16 %v1366, %v1364
    %v1519 = vpack.c.b16 %v1367, %v1365
    %v1520 = vpack.c.b16 %v1370, %v1368
    %v1521 = vpack.c.b16 %v1371, %v1369
    %v1522 = vpack.c.b16 %v1374, %v1372
    %v1523 = vpack.c.b16 %v1375, %v1373
    %v1524 = vpack.c.b16 %v1378, %v1376
    %v1525 = vpack.c.b16 %v1379, %v1377
    %v1526 = vpack.c.b16 %v1382, %v1380
    %v1527 = vpack.c.b16 %v1383, %v1381
    %v1528 = vpack.c.b16 %v1386, %v1384
    %v1529 = vpack.c.b16 %v1387, %v1385
    %v1530 = vpack.c.b16 %v1390, %v1388
    %v1531 = vpack.c.b16 %v1391, %v1389
    %v1532 = vpack.c.b16 %v1394, %v1392
    %v1533 = vpack.c.b16 %v1395, %v1393
    %v1534 = vpack.c.b16 %v1398, %v1396
    %v1535 = vpack.c.b16 %v1399, %v1397
    %v1536 = vpack.c.b16 %v1402, %v1400
    %v1537 = vpack.c.b16 %v1403, %v1401
    %v1538 = vpack.c.b16 %v1406, %v1404
    %v1539 = vpack.c.b16 %v1407, %v1405
    %v1540 = vpack.c.b16 %v1410, %v1408
    %v1541 = vpack.c.b16 %v1411, %v1409
    %v1542 = vpack.c.b16 %v1414, %v1412
    %v1543 = vpack.c.b16 %v1415, %v1413
    %v1544 = vpack.c.b16 %v1418, %v1416
    %v1545 = vpack.c.b16 %v1419, %v1417
    %v1546 = vpack.c.b16 %v1422, %v1420
    %v1547 = vpack.c.b16 %v1423, %v1421
    %v1548 = vpack.c.b16 %v1426, %v1424
    %v1549 = vpack.c.b16 %v1427, %v1425
    %v1550 = vpack.c.b16 %v1430, %v1428
    %v1551 = vpack.c.b16 %v1431, %v1429
    %v1552 = vpack.c.b16 %v1434, %v1432
    %v1553 = vpack.c.b16 %v1435, %v1433
    %v1554 = vpack.c.b16 %v1438, %v1436
    %v1555 = vpack.c.b16 %v1439, %v1437
    %v1556 = vpack.c.b16 %v1442, %v1440
    %v1557 = vpack.c.b16 %v1443, %v1441
    %v1558 = vpack.c.b16 %v1446, %v1444
    %v1559 = vpack.c.b16 %v1447, %v1445
    %v1560 = vpack.c.b16 %v1450, %v1448
    %v1561 = vpack.c.b16 %v1451, %v1449
    %v1562 = vpack.c.b16 %v1454, %v1452
    %v1563 = vpack.c.b16 %v1455, %v1453
    %v1564 = vpack.c.b16 %v1458, %v1456
    %v1565 = vpack.c.b16 %v1459, %v1457
    %v1566 = vpack.c.b16 %v1462, %v1460
    %v1567 = vpack.c.b16 %v1463, %v1461
    %v1568 = vpack.c.b16 %v1466, %v1464
    %v1569 = vpack.c.b16 %v1467, %v1465
    %v1570 = vpack.c.b16 %v1470, %v1468
    %v1571 = vpack.c.b16 %v1471, %v1469
    %v1572 = vpack.c.b16 %v1474, %v1472
    %v1573 = vpack.c.b16 %v1475, %v1473
    %v1574 = vpack.c.b16 %v1478, %v1476
    %v1575 = vpack.c.b16 %v1479, %v1477
    %1672 = vmatprep.subr.bf16.mxu0 %v1481
    %1673 = vmatpush1.bf16.msra.mxu0 %v1480
    %1674 = vmatprep.subr.bf16.mxu0 %v1483
    %1675 = vmatpush1.bf16.msra.mxu0 %v1482
    %1676 = vmatprep.subr.bf16.mxu0 %v1485
    %1677 = vmatpush1.bf16.msra.mxu0 %v1484
    %1678 = vmatprep.subr.bf16.mxu0 %v1487
    %1679 = vmatpush1.bf16.msra.mxu0 %v1486
    %1680 = vmatprep.subr.bf16.mxu0 %v1489
    %1681 = vmatpush1.bf16.msra.mxu0 %v1488
    %1682 = vmatprep.subr.bf16.mxu0 %v1491
    %1683 = vmatpush1.bf16.msra.mxu0 %v1490
    %1684 = vmatprep.subr.bf16.mxu0 %v1493
    %1685 = vmatpush1.bf16.msra.mxu0 %v1492
    %1686 = vmatprep.subr.bf16.mxu0 %v1495
    %1687 = vmatpush1.bf16.msra.mxu0 %v1494
    %1688 = vmatprep.subr.bf16.mxu0 %v1497
    %1689 = vmatpush1.bf16.msra.mxu0 %v1496
    %1690 = vmatprep.subr.bf16.mxu0 %v1499
    %1691 = vmatpush1.bf16.msra.mxu0 %v1498
    %1692 = vmatprep.subr.bf16.mxu0 %v1501
    %1693 = vmatpush1.bf16.msra.mxu0 %v1500
    %1694 = vmatprep.subr.bf16.mxu0 %v1503
    %1695 = vmatpush1.bf16.msra.mxu0 %v1502
    %1696 = vmatprep.subr.bf16.mxu0 %v1505
    %1697 = vmatpush1.bf16.msra.mxu0 %v1504
    %1698 = vmatprep.subr.bf16.mxu0 %v1507
    %1699 = vmatpush1.bf16.msra.mxu0 %v1506
    %1700 = vmatprep.subr.bf16.mxu0 %v1509
    %1701 = vmatpush1.bf16.msra.mxu0 %v1508
    %1702 = vmatprep.subr.bf16.mxu0 %v1511
    %1703 = vmatpush1.bf16.msra.mxu0 %v1510
    %1704 = vmatprep.mubr.bf16.mxu0 %v111
    %1705 = vmatmul.mubr.bf16.gmra.mrb[0].mxu0 %v110
    %v1706 = vpop.f32.mrb[0].mxu0
    %v1707 = vadd.f32 %v1185, %v1706
    %v1708 = vpop.f32.mrb[0].mxu0
    %v1709 = vadd.f32 %v1189, %v1708
    %v1710 = vpop.f32.mrb[0].mxu0
    %v1711 = vadd.f32 %v1185, %v1710
    %v1712 = vpop.f32.mrb[0].mxu0
    %v1713 = vadd.f32 %v1189, %v1712
    %1714 = vdwg.mxu0
    %1715 = vmatprep.subr.bf16.mxu0 %v1513
    %1716 = vmatpush1.bf16.msra.mxu0 %v1512
    %1717 = vmatprep.subr.bf16.mxu0 %v1515
    %1718 = vmatpush1.bf16.msra.mxu0 %v1514
    %1719 = vmatprep.subr.bf16.mxu0 %v1517
    %1720 = vmatpush1.bf16.msra.mxu0 %v1516
    %1721 = vmatprep.subr.bf16.mxu0 %v1519
    %1722 = vmatpush1.bf16.msra.mxu0 %v1518
    %1723 = vmatprep.subr.bf16.mxu0 %v1521
    %1724 = vmatpush1.bf16.msra.mxu0 %v1520
    %1725 = vmatprep.subr.bf16.mxu0 %v1523
    %1726 = vmatpush1.bf16.msra.mxu0 %v1522
    %1727 = vmatprep.subr.bf16.mxu0 %v1525
    %1728 = vmatpush1.bf16.msra.mxu0 %v1524
    %1729 = vmatprep.subr.bf16.mxu0 %v1527
    %1730 = vmatpush1.bf16.msra.mxu0 %v1526
    %1731 = vmatprep.subr.bf16.mxu0 %v1529
    %1732 = vmatpush1.bf16.msra.mxu0 %v1528
    %1733 = vmatprep.subr.bf16.mxu0 %v1531
    %1734 = vmatpush1.bf16.msra.mxu0 %v1530
    %1735 = vmatprep.subr.bf16.mxu0 %v1533
    %1736 = vmatpush1.bf16.msra.mxu0 %v1532
    %1737 = vmatprep.subr.bf16.mxu0 %v1535
    %1738 = vmatpush1.bf16.msra.mxu0 %v1534
    %1739 = vmatprep.subr.bf16.mxu0 %v1537
    %1740 = vmatpush1.bf16.msra.mxu0 %v1536
    %1741 = vmatprep.subr.bf16.mxu0 %v1539
    %1742 = vmatpush1.bf16.msra.mxu0 %v1538
    %1743 = vmatprep.subr.bf16.mxu0 %v1541
    %1744 = vmatpush1.bf16.msra.mxu0 %v1540
    %1745 = vmatprep.subr.bf16.mxu0 %v1543
    %1746 = vmatpush1.bf16.msra.mxu0 %v1542
    %1747 = vmatprep.mubr.bf16.mxu0 %v113
    %1748 = vmatmul.mubr.bf16.gmra.mrb[0].mxu0 %v112
    %v1749 = vpop.f32.mrb[0].mxu0
    %v1750 = vadd.f32 %v1707, %v1749
    %v1751 = vpop.f32.mrb[0].mxu0
    %v1752 = vadd.f32 %v1709, %v1751
    %v1753 = vpop.f32.mrb[0].mxu0
    %v1754 = vadd.f32 %v1711, %v1753
    %v1755 = vpop.f32.mrb[0].mxu0
    %v1756 = vadd.f32 %v1713, %v1755
    %1757 = vdwg.mxu0
    %1758 = vmatprep.subr.bf16.mxu0 %v1545
    %1759 = vmatpush1.bf16.msra.mxu0 %v1544
    %1760 = vmatprep.subr.bf16.mxu0 %v1547
    %1761 = vmatpush1.bf16.msra.mxu0 %v1546
    %1762 = vmatprep.subr.bf16.mxu0 %v1549
    %1763 = vmatpush1.bf16.msra.mxu0 %v1548
    %1764 = vmatprep.subr.bf16.mxu0 %v1551
    %1765 = vmatpush1.bf16.msra.mxu0 %v1550
    %1766 = vmatprep.subr.bf16.mxu0 %v1553
    %1767 = vmatpush1.bf16.msra.mxu0 %v1552
    %1768 = vmatprep.subr.bf16.mxu0 %v1555
    %1769 = vmatpush1.bf16.msra.mxu0 %v1554
    %1770 = vmatprep.subr.bf16.mxu0 %v1557
    %1771 = vmatpush1.bf16.msra.mxu0 %v1556
    %1772 = vmatprep.subr.bf16.mxu0 %v1559
    %1773 = vmatpush1.bf16.msra.mxu0 %v1558
    %1774 = vmatprep.subr.bf16.mxu0 %v1561
    %1775 = vmatpush1.bf16.msra.mxu0 %v1560
    %1776 = vmatprep.subr.bf16.mxu0 %v1563
    %1777 = vmatpush1.bf16.msra.mxu0 %v1562
    %1778 = vmatprep.subr.bf16.mxu0 %v1565
    %1779 = vmatpush1.bf16.msra.mxu0 %v1564
    %1780 = vmatprep.subr.bf16.mxu0 %v1567
    %1781 = vmatpush1.bf16.msra.mxu0 %v1566
    %1782 = vmatprep.subr.bf16.mxu0 %v1569
    %1783 = vmatpush1.bf16.msra.mxu0 %v1568
    %1784 = vmatprep.subr.bf16.mxu0 %v1571
    %1785 = vmatpush1.bf16.msra.mxu0 %v1570
    %1786 = vmatprep.subr.bf16.mxu0 %v1573
    %1787 = vmatpush1.bf16.msra.mxu0 %v1572
    %1788 = vmatprep.subr.bf16.mxu0 %v1575
    %1789 = vmatpush1.bf16.msra.mxu0 %v1574
    %1790 = vmatprep.mubr.bf16.mxu0 %v115
    %1791 = vmatmul.mubr.bf16.gmra.mrb[0].mxu0 %v114
    %v1792 = vpop.f32.mrb[0].mxu0
    %v1793 = vadd.f32 %v1750, %v1792
    %v1794 = vpop.f32.mrb[0].mxu0
    %v1795 = vadd.f32 %v1752, %v1794
    %v1796 = vpop.f32.mrb[0].mxu0
    %v1797 = vadd.f32 %v1754, %v1796
    %v1798 = vpop.f32.mrb[0].mxu0
    %v1799 = vadd.f32 %v1756, %v1798
    %1800 = vdwg.mxu0
    %v1801 = vmax.f32 %v1793, 0.0
    %v1802 = vmax.f32 %v1797, 0.0
    %v1803 = vxor.u32 %v1795, 2147483648
    %v1804 = vxor.u32 %v1799, 2147483648
    %v1805 = vmul.f32 %v1803, 1.442695
    %v1806 = vpow.pop %v1805
    %v1807 = vmul.f32 %v1804, 1.442695
    %v1808 = vpow.pop %v1807
    %v1809 = vadd.f32 %v1806, 1.0
    %v1810 = vadd.f32 %v1808, 1.0
    %v1811 = vrcp.pop %v1809
    %v1812 = vmul.f32 1.0, %v1811
    %v1813 = vrcp.pop %v1810
    %v1814 = vmul.f32 1.0, %v1813
    %v1815 = vld [vmem:[%s5] sm:$0xf]
    %v1816 = vld [vmem:[%s5 + $0x4] sm:$0xf]
    %v1817 = vld [vmem:[%s5 + $0x8] sm:$0xf]
    %v1818 = vld [vmem:[%s5 + $0xc] sm:$0xf]
    %v1819 = vld [vmem:[%s5 + $0x10] sm:$0xf]
    %v1820 = vld [vmem:[%s5 + $0x14] sm:$0xf]
    %v1821 = vld [vmem:[%s5 + $0x18] sm:$0xf]
    %v1822 = vld [vmem:[%s5 + $0x1c] sm:$0xf]
    %v1823 = vld [vmem:[%s5 + $0x20] sm:$0xf]
    %v1824 = vld [vmem:[%s5 + $0x24] sm:$0xf]
    %v1825 = vld [vmem:[%s5 + $0x28] sm:$0xf]
    %v1826 = vld [vmem:[%s5 + $0x2c] sm:$0xf]
    %v1827 = vld [vmem:[%s5 + $0x30] sm:$0xf]
    %v1828 = vld [vmem:[%s5 + $0x34] sm:$0xf]
    %v1829 = vld [vmem:[%s5 + $0x38] sm:$0xf]
    %v1830 = vld [vmem:[%s5 + $0x3c] sm:$0xf]
    %v1831 = vld [vmem:[%s5 + $0x40] sm:$0xf]
    %v1832 = vld [vmem:[%s5 + $0x44] sm:$0xf]
    %v1833 = vld [vmem:[%s5 + $0x48] sm:$0xf]
    %v1835 = vlaneseq
    %v1836 = vshrl.u32 %v1835, 7
    %v1837 = vsub.s32 0, %v1836
    %v1838 = vrot.slane %v124, %v1837
    %v1859 = vunpack.c.l.b16 %v1815
    %v1860 = vunpack.c.l.b16 %v1816
    %v1861 = vunpack.c.l.b16 %v1817
    %v1862 = vunpack.c.l.b16 %v1818
    %v1863 = vunpack.c.l.b16 %v1819
    %v1864 = vunpack.c.l.b16 %v1820
    %v1865 = vunpack.c.l.b16 %v1821
    %v1866 = vunpack.c.l.b16 %v1822
    %v1867 = vunpack.c.l.b16 %v1823
    %v1868 = vunpack.c.l.b16 %v1824
    %v1869 = vunpack.c.l.b16 %v1825
    %v1870 = vunpack.c.l.b16 %v1826
    %v1871 = vunpack.c.l.b16 %v1827
    %v1872 = vunpack.c.l.b16 %v1828
    %v1873 = vunpack.c.l.b16 %v1829
    %v1874 = vunpack.c.l.b16 %v1830
    %v1875 = vunpack.c.l.b16 %v1831
    %v1876 = vunpack.c.l.b16 %v1832
    %v1877 = vunpack.c.l.b16 %v1833
    %v1878 = vpack.c.b16 %v1860, %v1859
    %v1879 = vpack.c.b16 %v1862, %v1861
    %v1880 = vpack.c.b16 %v1864, %v1863
    %v1881 = vpack.c.b16 %v1866, %v1865
    %v1882 = vpack.c.b16 %v1868, %v1867
    %v1883 = vpack.c.b16 %v1870, %v1869
    %v1884 = vpack.c.b16 %v1872, %v1871
    %v1885 = vpack.c.b16 %v1874, %v1873
    %v1886 = vpack.c.b16 %v1876, %v1875
    %v1887 = vpack.c.b16 %v1877, %v1877
    %vm1897 = vcmask 195584
    %v1899 = vsel %vm1897, %v121, 0
    %v1902 = vsel %vm892, %v1887, 0
    %1904 = vmatprep.subr.bf16.mxu0 0
    %1905 = vmatpush1.bf16.msra.mxu0 %v1878
    %1906 = vmatprep.subr.bf16.mxu0 0
    %1907 = vmatpush1.bf16.msra.mxu0 %v1879
    %1908 = vmatprep.subr.bf16.mxu0 0
    %1909 = vmatpush1.bf16.msra.mxu0 %v1880
    %1910 = vmatprep.subr.bf16.mxu0 0
    %1911 = vmatpush1.bf16.msra.mxu0 %v1881
    %1912 = vmatprep.subr.bf16.mxu0 0
    %1913 = vmatpush1.bf16.msra.mxu0 %v1882
    %1914 = vmatprep.subr.bf16.mxu0 0
    %1915 = vmatpush1.bf16.msra.mxu0 %v1883
    %1916 = vmatprep.subr.bf16.mxu0 0
    %1917 = vmatpush1.bf16.msra.mxu0 %v1884
    %1918 = vmatprep.subr.bf16.mxu0 0
    %1919 = vmatpush1.bf16.msra.mxu0 %v1885
    %1920 = vmatprep.subr.bf16.mxu0 0
    %1921 = vmatpush1.bf16.msra.mxu0 %v1886
    %1922 = vmatprep.subr.bf16.mxu0 0
    %1923 = vmatpush1.bf16.msra.mxu0 %v1902
    %1924 = vmatprep.subr.bf16.mxu0 0
    %1925 = vmatpush1.bf16.msra.mxu0 0
    %1926 = vmatprep.subr.bf16.mxu0 0
    %1927 = vmatpush1.bf16.msra.mxu0 0
    %1928 = vmatprep.subr.bf16.mxu0 0
    %1929 = vmatpush1.bf16.msra.mxu0 0
    %1930 = vmatprep.subr.bf16.mxu0 0
    %1931 = vmatpush1.bf16.msra.mxu0 0
    %1932 = vmatprep.subr.bf16.mxu0 0
    %1933 = vmatpush1.bf16.msra.mxu0 0
    %1934 = vmatprep.subr.bf16.mxu0 0
    %1935 = vmatpush1.bf16.msra.mxu0 0
    %1936 = vmatprep.mubr.bf16.mxu0 %v1899
    %1937 = vmatmul.mubr.bf16.gmra.mrb[0].mxu0 %v120
    %v1938 = vpop.f32.mrb[0].mxu0
    %v1939 = vadd.f32 %v1838, %v1938
    %v1940 = vpop.f32.mrb[0].mxu0
    %v1941 = vpop.f32.mrb[0].mxu0
    %v1942 = vadd.f32 %v1838, %v1941
    %v1943 = vpop.f32.mrb[0].mxu0
    %1944 = vdwg.mxu0
    %v1945 = vmax.f32 %v1939, 0.0
    %v1946 = vmax.f32 %v1942, 0.0
    %v1947 = vmul.f32 %v1812, %v1071
    %v1948 = vmul.f32 %v1814, %v1072
    %v1949 = vmul.f32 %v1082, %v1801
    %v1950 = vmul.f32 %v1084, %v1802
    %v1951 = vpack.c.bf16 %v1948, %v1947
    %v1952 = vpack.c.bf16 %v1950, %v1949
    %v1953 = vpack.c.bf16 %v1946, %v1945
    %v1954 = vld [vmem:[#allocation6] sm:$0xff]
    %v1955 = vld [vmem:[#allocation6 + $0x8] sm:$0xf]
    %v1956 = vld [vmem:[#allocation6 + $0xc] sm:$0xff]
    %v1957 = vld [vmem:[#allocation6 + $0x14] sm:$0xf]
    %v1958 = vld [vmem:[#allocation6 + $0x18] sm:$0xff]
    %v1959 = vld [vmem:[#allocation6 + $0x20] sm:$0xf]
    %v1960 = vld [vmem:[#allocation6 + $0x24] sm:$0xff]
    %v1961 = vld [vmem:[#allocation6 + $0x2c] sm:$0xf]
    %v1962 = vld [vmem:[#allocation6 + $0x30] sm:$0xff]
    %v1963 = vld [vmem:[#allocation6 + $0x38] sm:$0xf]
    %v1964 = vld [vmem:[#allocation6 + $0x3c] sm:$0xff]
    %v1965 = vld [vmem:[#allocation6 + $0x44] sm:$0xf]
    %v1966 = vld [vmem:[#allocation6 + $0x48] sm:$0xff]
    %v1967 = vld [vmem:[#allocation6 + $0x50] sm:$0xf]
    %v1968 = vld [vmem:[#allocation6 + $0x54] sm:$0xff]
    %v1969 = vld [vmem:[#allocation6 + $0x5c] sm:$0xf]
    %v1970 = vld [vmem:[#allocation6 + $0x60] sm:$0xff]
    %v1971 = vld [vmem:[#allocation6 + $0x68] sm:$0xf]
    %v1972 = vld [vmem:[#allocation6 + $0x6c] sm:$0xff]
    %v1973 = vld [vmem:[#allocation6 + $0x74] sm:$0xf]
    %v1974 = vld [vmem:[#allocation6 + $0x78] sm:$0xff]
    %v1975 = vld [vmem:[#allocation6 + $0x80] sm:$0xf]
    %v1976 = vld [vmem:[#allocation6 + $0x84] sm:$0xff]
    %v1977 = vld [vmem:[#allocation6 + $0x8c] sm:$0xf]
    %v1978 = vld [vmem:[#allocation6 + $0x90] sm:$0xff]
    %v1979 = vld [vmem:[#allocation6 + $0x98] sm:$0xf]
    %v1980 = vld [vmem:[#allocation6 + $0x9c] sm:$0xff]
    %v1981 = vld [vmem:[#allocation6 + $0xa4] sm:$0xf]
    %v1982 = vld [vmem:[#allocation6 + $0xa8] sm:$0xff]
    %v1983 = vld [vmem:[#allocation6 + $0xb0] sm:$0xf]
    %v1984 = vld [vmem:[#allocation6 + $0xb4] sm:$0xff]
    %v1985 = vld [vmem:[#allocation6 + $0xbc] sm:$0xf]
    %v1986 = vld [vmem:[#allocation6 + $0xc0] sm:$0xff]
    %v1987 = vld [vmem:[#allocation6 + $0xc8] sm:$0xf]
    %v1988 = vld [vmem:[#allocation6 + $0xcc] sm:$0xff]
    %v1989 = vld [vmem:[#allocation6 + $0xd4] sm:$0xf]
    %v1990 = vld [vmem:[#allocation6 + $0xd8] sm:$0xff]
    %v1991 = vld [vmem:[#allocation6 + $0xe0] sm:$0xf]
    %v1992 = vld [vmem:[#allocation6 + $0xe4] sm:$0xff]
    %v1993 = vld [vmem:[#allocation6 + $0xec] sm:$0xf]
    %v1994 = vld [vmem:[#allocation6 + $0xf0] sm:$0xff]
    %v1995 = vld [vmem:[#allocation6 + $0xf8] sm:$0xf]
    %v1996 = vld [vmem:[#allocation6 + $0xfc] sm:$0xff]
    %v1997 = vld [vmem:[#allocation6 + $0x104] sm:$0xf]
    %v1998 = vld [vmem:[#allocation6 + $0x108] sm:$0xff]
    %v1999 = vld [vmem:[#allocation6 + $0x110] sm:$0xf]
    %v2000 = vld [vmem:[#allocation6 + $0x114] sm:$0xff]
    %v2001 = vld [vmem:[#allocation6 + $0x11c] sm:$0xf]
    %v2002 = vld [vmem:[#allocation6 + $0x120] sm:$0xff]
    %v2003 = vld [vmem:[#allocation6 + $0x128] sm:$0xf]
    %v2004 = vld [vmem:[#allocation6 + $0x12c] sm:$0xff]
    %v2005 = vld [vmem:[#allocation6 + $0x134] sm:$0xf]
    %v2006 = vld [vmem:[#allocation6 + $0x138] sm:$0xff]
    %v2007 = vld [vmem:[#allocation6 + $0x140] sm:$0xf]
    %v2008 = vld [vmem:[#allocation6 + $0x144] sm:$0xff]
    %v2009 = vld [vmem:[#allocation6 + $0x14c] sm:$0xf]
    %v2010 = vld [vmem:[#allocation6 + $0x150] sm:$0xff]
    %v2011 = vld [vmem:[#allocation6 + $0x158] sm:$0xf]
    %v2012 = vld [vmem:[#allocation6 + $0x15c] sm:$0xff]
    %v2013 = vld [vmem:[#allocation6 + $0x164] sm:$0xf]
    %v2014 = vld [vmem:[#allocation6 + $0x168] sm:$0xff]
    %v2015 = vld [vmem:[#allocation6 + $0x170] sm:$0xf]
    %v2016 = vld [vmem:[#allocation6 + $0x174] sm:$0xff]
    %v2017 = vld [vmem:[#allocation6 + $0x17c] sm:$0xf]
    %v2018 = vld [vmem:[#allocation6 + $0x180] sm:$0xff]
    %v2019 = vld [vmem:[#allocation6 + $0x188] sm:$0xf]
    %v2020 = vld [vmem:[#allocation6 + $0x18c] sm:$0xff]
    %v2021 = vld [vmem:[#allocation6 + $0x194] sm:$0xf]
    %v2022 = vld [vmem:[#allocation6 + $0x198] sm:$0xff]
    %v2023 = vld [vmem:[#allocation6 + $0x1a0] sm:$0xf]
    %v2024 = vld [vmem:[#allocation6 + $0x1a4] sm:$0xff]
    %v2025 = vld [vmem:[#allocation6 + $0x1ac] sm:$0xf]
    %v2026 = vld [vmem:[#allocation6 + $0x1b0] sm:$0xff]
    %v2027 = vld [vmem:[#allocation6 + $0x1b8] sm:$0xf]
    %v2028 = vld [vmem:[#allocation6 + $0x1bc] sm:$0xff]
    %v2029 = vld [vmem:[#allocation6 + $0x1c4] sm:$0xf]
    %v2030 = vld [vmem:[#allocation6 + $0x1c8] sm:$0xff]
    %v2031 = vld [vmem:[#allocation6 + $0x1d0] sm:$0xf]
    %v2032 = vld [vmem:[#allocation6 + $0x1d4] sm:$0xff]
    %v2033 = vld [vmem:[#allocation6 + $0x1dc] sm:$0xf]
    %v2034 = vld [vmem:[#allocation6 + $0x1e0] sm:$0xff]
    %v2035 = vld [vmem:[#allocation6 + $0x1e8] sm:$0xf]
    %v2036 = vld [vmem:[#allocation6 + $0x1ec] sm:$0xff]
    %v2037 = vld [vmem:[#allocation6 + $0x1f4] sm:$0xf]
    %v2038 = vld [vmem:[#allocation6 + $0x1f8] sm:$0xff]
    %v2039 = vld [vmem:[#allocation6 + $0x200] sm:$0xf]
    %v2040 = vld [vmem:[#allocation6 + $0x204] sm:$0xff]
    %v2041 = vld [vmem:[#allocation6 + $0x20c] sm:$0xf]
    %v2042 = vld [vmem:[#allocation6 + $0x210] sm:$0xff]
    %v2043 = vld [vmem:[#allocation6 + $0x218] sm:$0xf]
    %v2044 = vld [vmem:[#allocation6 + $0x21c] sm:$0xff]
    %v2045 = vld [vmem:[#allocation6 + $0x224] sm:$0xf]
    %v2046 = vld [vmem:[#allocation6 + $0x228] sm:$0xff]
    %v2047 = vld [vmem:[#allocation6 + $0x230] sm:$0xf]
    %v2048 = vld [vmem:[#allocation6 + $0x234] sm:$0xff]
    %v2049 = vld [vmem:[#allocation6 + $0x23c] sm:$0xf]
    %v2051 = vlaneseq
    %v2052 = vshrl.u32 %v2051, 7
    %v2053 = vsub.s32 0, %v2052
    %v2054 = vrot.slane %v125, %v2053
    %v2055 = vlaneseq
    %v2056 = vshrl.u32 %v2055, 7
    %v2057 = vsub.s32 1, %v2056
    %v2058 = vrot.slane %v125, %v2057
    %v2059 = vlaneseq
    %v2060 = vshrl.u32 %v2059, 7
    %v2061 = vsub.s32 2, %v2060
    %v2062 = vrot.slane %v125, %v2061
    %v2162 = vunpack.c.l.b16 %v1954
    %v2163 = vunpack.c.h.b16 %v1954
    %v2164 = vunpack.c.l.b16 %v1955
    %v2165 = vunpack.c.l.b16 %v1956
    %v2166 = vunpack.c.h.b16 %v1956
    %v2167 = vunpack.c.l.b16 %v1957
    %v2168 = vunpack.c.l.b16 %v1958
    %v2169 = vunpack.c.h.b16 %v1958
    %v2170 = vunpack.c.l.b16 %v1959
    %v2171 = vunpack.c.l.b16 %v1960
    %v2172 = vunpack.c.h.b16 %v1960
    %v2173 = vunpack.c.l.b16 %v1961
    %v2174 = vunpack.c.l.b16 %v1962
    %v2175 = vunpack.c.h.b16 %v1962
    %v2176 = vunpack.c.l.b16 %v1963
    %v2177 = vunpack.c.l.b16 %v1964
    %v2178 = vunpack.c.h.b16 %v1964
    %v2179 = vunpack.c.l.b16 %v1965
    %v2180 = vunpack.c.l.b16 %v1966
    %v2181 = vunpack.c.h.b16 %v1966
    %v2182 = vunpack.c.l.b16 %v1967
    %v2183 = vunpack.c.l.b16 %v1968
    %v2184 = vunpack.c.h.b16 %v1968
    %v2185 = vunpack.c.l.b16 %v1969
    %v2186 = vunpack.c.l.b16 %v1970
    %v2187 = vunpack.c.h.b16 %v1970
    %v2188 = vunpack.c.l.b16 %v1971
    %v2189 = vunpack.c.l.b16 %v1972
    %v2190 = vunpack.c.h.b16 %v1972
    %v2191 = vunpack.c.l.b16 %v1973
    %v2192 = vunpack.c.l.b16 %v1974
    %v2193 = vunpack.c.h.b16 %v1974
    %v2194 = vunpack.c.l.b16 %v1975
    %v2195 = vunpack.c.l.b16 %v1976
    %v2196 = vunpack.c.h.b16 %v1976
    %v2197 = vunpack.c.l.b16 %v1977
    %v2198 = vunpack.c.l.b16 %v1978
    %v2199 = vunpack.c.h.b16 %v1978
    %v2200 = vunpack.c.l.b16 %v1979
    %v2201 = vunpack.c.l.b16 %v1980
    %v2202 = vunpack.c.h.b16 %v1980
    %v2203 = vunpack.c.l.b16 %v1981
    %v2204 = vunpack.c.l.b16 %v1982
    %v2205 = vunpack.c.h.b16 %v1982
    %v2206 = vunpack.c.l.b16 %v1983
    %v2207 = vunpack.c.l.b16 %v1984
    %v2208 = vunpack.c.h.b16 %v1984
    %v2209 = vunpack.c.l.b16 %v1985
    %v2210 = vunpack.c.l.b16 %v1986
    %v2211 = vunpack.c.h.b16 %v1986
    %v2212 = vunpack.c.l.b16 %v1987
    %v2213 = vunpack.c.l.b16 %v1988
    %v2214 = vunpack.c.h.b16 %v1988
    %v2215 = vunpack.c.l.b16 %v1989
    %v2216 = vunpack.c.l.b16 %v1990
    %v2217 = vunpack.c.h.b16 %v1990
    %v2218 = vunpack.c.l.b16 %v1991
    %v2219 = vunpack.c.l.b16 %v1992
    %v2220 = vunpack.c.h.b16 %v1992
    %v2221 = vunpack.c.l.b16 %v1993
    %v2222 = vunpack.c.l.b16 %v1994
    %v2223 = vunpack.c.h.b16 %v1994
    %v2224 = vunpack.c.l.b16 %v1995
    %v2225 = vunpack.c.l.b16 %v1996
    %v2226 = vunpack.c.h.b16 %v1996
    %v2227 = vunpack.c.l.b16 %v1997
    %v2228 = vunpack.c.l.b16 %v1998
    %v2229 = vunpack.c.h.b16 %v1998
    %v2230 = vunpack.c.l.b16 %v1999
    %v2231 = vunpack.c.l.b16 %v2000
    %v2232 = vunpack.c.h.b16 %v2000
    %v2233 = vunpack.c.l.b16 %v2001
    %v2234 = vunpack.c.l.b16 %v2002
    %v2235 = vunpack.c.h.b16 %v2002
    %v2236 = vunpack.c.l.b16 %v2003
    %v2237 = vunpack.c.l.b16 %v2004
    %v2238 = vunpack.c.h.b16 %v2004
    %v2239 = vunpack.c.l.b16 %v2005
    %v2240 = vunpack.c.l.b16 %v2006
    %v2241 = vunpack.c.h.b16 %v2006
    %v2242 = vunpack.c.l.b16 %v2007
    %v2243 = vunpack.c.l.b16 %v2008
    %v2244 = vunpack.c.h.b16 %v2008
    %v2245 = vunpack.c.l.b16 %v2009
    %v2246 = vunpack.c.l.b16 %v2010
    %v2247 = vunpack.c.h.b16 %v2010
    %v2248 = vunpack.c.l.b16 %v2011
    %v2249 = vunpack.c.l.b16 %v2012
    %v2250 = vunpack.c.h.b16 %v2012
    %v2251 = vunpack.c.l.b16 %v2013
    %v2252 = vunpack.c.l.b16 %v2014
    %v2253 = vunpack.c.h.b16 %v2014
    %v2254 = vunpack.c.l.b16 %v2015
    %v2255 = vunpack.c.l.b16 %v2016
    %v2256 = vunpack.c.h.b16 %v2016
    %v2257 = vunpack.c.l.b16 %v2017
    %v2258 = vunpack.c.l.b16 %v2018
    %v2259 = vunpack.c.h.b16 %v2018
    %v2260 = vunpack.c.l.b16 %v2019
    %v2261 = vunpack.c.l.b16 %v2020
    %v2262 = vunpack.c.h.b16 %v2020
    %v2263 = vunpack.c.l.b16 %v2021
    %v2264 = vunpack.c.l.b16 %v2022
    %v2265 = vunpack.c.h.b16 %v2022
    %v2266 = vunpack.c.l.b16 %v2023
    %v2267 = vunpack.c.l.b16 %v2024
    %v2268 = vunpack.c.h.b16 %v2024
    %v2269 = vunpack.c.l.b16 %v2025
    %v2270 = vunpack.c.l.b16 %v2026
    %v2271 = vunpack.c.h.b16 %v2026
    %v2272 = vunpack.c.l.b16 %v2027
    %v2273 = vunpack.c.l.b16 %v2028
    %v2274 = vunpack.c.h.b16 %v2028
    %v2275 = vunpack.c.l.b16 %v2029
    %v2276 = vunpack.c.l.b16 %v2030
    %v2277 = vunpack.c.h.b16 %v2030
    %v2278 = vunpack.c.l.b16 %v2031
    %v2279 = vunpack.c.l.b16 %v2032
    %v2280 = vunpack.c.h.b16 %v2032
    %v2281 = vunpack.c.l.b16 %v2033
    %v2282 = vunpack.c.l.b16 %v2034
    %v2283 = vunpack.c.h.b16 %v2034
    %v2284 = vunpack.c.l.b16 %v2035
    %v2285 = vunpack.c.l.b16 %v2036
    %v2286 = vunpack.c.h.b16 %v2036
    %v2287 = vunpack.c.l.b16 %v2037
    %v2288 = vunpack.c.l.b16 %v2038
    %v2289 = vunpack.c.h.b16 %v2038
    %v2290 = vunpack.c.l.b16 %v2039
    %v2291 = vunpack.c.l.b16 %v2040
    %v2292 = vunpack.c.h.b16 %v2040
    %v2293 = vunpack.c.l.b16 %v2041
    %v2294 = vunpack.c.l.b16 %v2042
    %v2295 = vunpack.c.h.b16 %v2042
    %v2296 = vunpack.c.l.b16 %v2043
    %v2297 = vunpack.c.l.b16 %v2044
    %v2298 = vunpack.c.h.b16 %v2044
    %v2299 = vunpack.c.l.b16 %v2045
    %v2300 = vunpack.c.l.b16 %v2046
    %v2301 = vunpack.c.h.b16 %v2046
    %v2302 = vunpack.c.l.b16 %v2047
    %v2303 = vunpack.c.l.b16 %v2048
    %v2304 = vunpack.c.h.b16 %v2048
    %v2305 = vunpack.c.l.b16 %v2049
    %v2306 = vpack.c.b16 %v2165, %v2162
    %v2307 = vpack.c.b16 %v2166, %v2163
    %v2308 = vpack.c.b16 %v2167, %v2164
    %v2309 = vpack.c.b16 %v2171, %v2168
    %v2310 = vpack.c.b16 %v2172, %v2169
    %v2311 = vpack.c.b16 %v2173, %v2170
    %v2312 = vpack.c.b16 %v2177, %v2174
    %v2313 = vpack.c.b16 %v2178, %v2175
    %v2314 = vpack.c.b16 %v2179, %v2176
    %v2315 = vpack.c.b16 %v2183, %v2180
    %v2316 = vpack.c.b16 %v2184, %v2181
    %v2317 = vpack.c.b16 %v2185, %v2182
    %v2318 = vpack.c.b16 %v2189, %v2186
    %v2319 = vpack.c.b16 %v2190, %v2187
    %v2320 = vpack.c.b16 %v2191, %v2188
    %v2321 = vpack.c.b16 %v2195, %v2192
    %v2322 = vpack.c.b16 %v2196, %v2193
    %v2323 = vpack.c.b16 %v2197, %v2194
    %v2324 = vpack.c.b16 %v2201, %v2198
    %v2325 = vpack.c.b16 %v2202, %v2199
    %v2326 = vpack.c.b16 %v2203, %v2200
    %v2327 = vpack.c.b16 %v2207, %v2204
    %v2328 = vpack.c.b16 %v2208, %v2205
    %v2329 = vpack.c.b16 %v2209, %v2206
    %v2330 = vpack.c.b16 %v2213, %v2210
    %v2331 = vpack.c.b16 %v2214, %v2211
    %v2332 = vpack.c.b16 %v2215, %v2212
    %v2333 = vpack.c.b16 %v2219, %v2216
    %v2334 = vpack.c.b16 %v2220, %v2217
    %v2335 = vpack.c.b16 %v2221, %v2218
    %v2336 = vpack.c.b16 %v2225, %v2222
    %v2337 = vpack.c.b16 %v2226, %v2223
    %v2338 = vpack.c.b16 %v2227, %v2224
    %v2339 = vpack.c.b16 %v2231, %v2228
    %v2340 = vpack.c.b16 %v2232, %v2229
    %v2341 = vpack.c.b16 %v2233, %v2230
    %v2342 = vpack.c.b16 %v2237, %v2234
    %v2343 = vpack.c.b16 %v2238, %v2235
    %v2344 = vpack.c.b16 %v2239, %v2236
    %v2345 = vpack.c.b16 %v2243, %v2240
    %v2346 = vpack.c.b16 %v2244, %v2241
    %v2347 = vpack.c.b16 %v2245, %v2242
    %v2348 = vpack.c.b16 %v2249, %v2246
    %v2349 = vpack.c.b16 %v2250, %v2247
    %v2350 = vpack.c.b16 %v2251, %v2248
    %v2351 = vpack.c.b16 %v2255, %v2252
    %v2352 = vpack.c.b16 %v2256, %v2253
    %v2353 = vpack.c.b16 %v2257, %v2254
    %v2354 = vpack.c.b16 %v2261, %v2258
    %v2355 = vpack.c.b16 %v2262, %v2259
    %v2356 = vpack.c.b16 %v2263, %v2260
    %v2357 = vpack.c.b16 %v2267, %v2264
    %v2358 = vpack.c.b16 %v2268, %v2265
    %v2359 = vpack.c.b16 %v2269, %v2266
    %v2360 = vpack.c.b16 %v2273, %v2270
    %v2361 = vpack.c.b16 %v2274, %v2271
    %v2362 = vpack.c.b16 %v2275, %v2272
    %v2363 = vpack.c.b16 %v2279, %v2276
    %v2364 = vpack.c.b16 %v2280, %v2277
    %v2365 = vpack.c.b16 %v2281, %v2278
    %v2366 = vpack.c.b16 %v2285, %v2282
    %v2367 = vpack.c.b16 %v2286, %v2283
    %v2368 = vpack.c.b16 %v2287, %v2284
    %v2369 = vpack.c.b16 %v2291, %v2288
    %v2370 = vpack.c.b16 %v2292, %v2289
    %v2371 = vpack.c.b16 %v2293, %v2290
    %v2372 = vpack.c.b16 %v2297, %v2294
    %v2373 = vpack.c.b16 %v2298, %v2295
    %v2374 = vpack.c.b16 %v2299, %v2296
    %v2375 = vpack.c.b16 %v2303, %v2300
    %v2376 = vpack.c.b16 %v2304, %v2301
    %v2377 = vpack.c.b16 %v2305, %v2302
    %2450 = vmatprep.subr.bf16.mxu0 %v2307
    %2451 = vmatpush1.bf16.msra.mxu0 %v2306
    %2452 = vmatprep.subr.bf16.mxu0 %v2310
    %2453 = vmatpush1.bf16.msra.mxu0 %v2309
    %2454 = vmatprep.subr.bf16.mxu0 %v2313
    %2455 = vmatpush1.bf16.msra.mxu0 %v2312
    %2456 = vmatprep.subr.bf16.mxu0 %v2316
    %2457 = vmatpush1.bf16.msra.mxu0 %v2315
    %2458 = vmatprep.subr.bf16.mxu0 %v2319
    %2459 = vmatpush1.bf16.msra.mxu0 %v2318
    %2460 = vmatprep.subr.bf16.mxu0 %v2322
    %2461 = vmatpush1.bf16.msra.mxu0 %v2321
    %2462 = vmatprep.subr.bf16.mxu0 %v2325
    %2463 = vmatpush1.bf16.msra.mxu0 %v2324
    %2464 = vmatprep.subr.bf16.mxu0 %v2328
    %2465 = vmatpush1.bf16.msra.mxu0 %v2327
    %2466 = vmatprep.subr.bf16.mxu0 %v2331
    %2467 = vmatpush1.bf16.msra.mxu0 %v2330
    %2468 = vmatprep.subr.bf16.mxu0 %v2334
    %2469 = vmatpush1.bf16.msra.mxu0 %v2333
    %2470 = vmatprep.subr.bf16.mxu0 %v2337
    %2471 = vmatpush1.bf16.msra.mxu0 %v2336
    %2472 = vmatprep.subr.bf16.mxu0 %v2340
    %2473 = vmatpush1.bf16.msra.mxu0 %v2339
    %2474 = vmatprep.subr.bf16.mxu0 %v2343
    %2475 = vmatpush1.bf16.msra.mxu0 %v2342
    %2476 = vmatprep.subr.bf16.mxu0 %v2346
    %2477 = vmatpush1.bf16.msra.mxu0 %v2345
    %2478 = vmatprep.subr.bf16.mxu0 %v2349
    %2479 = vmatpush1.bf16.msra.mxu0 %v2348
    %2480 = vmatprep.subr.bf16.mxu0 %v2352
    %2481 = vmatpush1.bf16.msra.mxu0 %v2351
    %2482 = vmatprep.mubr.bf16.mxu0 %v1952
    %2483 = vmatmul.mubr.bf16.gmra.mrb[0].mxu0 %v1951
    %v2484 = vpop.f32.mrb[0].mxu0
    %v2485 = vadd.f32 %v2054, %v2484
    %v2486 = vpop.f32.mrb[0].mxu0
    %v2487 = vadd.f32 %v2058, %v2486
    %v2488 = vpop.f32.mrb[0].mxu0
    %v2489 = vadd.f32 %v2054, %v2488
    %v2490 = vpop.f32.mrb[0].mxu0
    %v2491 = vadd.f32 %v2058, %v2490
    %2492 = vdwg.mxu0
    %2493 = vmatprep.subr.bf16.mxu0 %v2355
    %2494 = vmatpush1.bf16.msra.mxu0 %v2354
    %2495 = vmatprep.subr.bf16.mxu0 %v2358
    %2496 = vmatpush1.bf16.msra.mxu0 %v2357
    %2497 = vmatprep.subr.bf16.mxu0 %v2361
    %2498 = vmatpush1.bf16.msra.mxu0 %v2360
    %2499 = vmatprep.subr.bf16.mxu0 %v2364
    %2500 = vmatpush1.bf16.msra.mxu0 %v2363
    %2501 = vmatprep.subr.bf16.mxu0 %v2367
    %2502 = vmatpush1.bf16.msra.mxu0 %v2366
    %2503 = vmatprep.subr.bf16.mxu0 %v2370
    %2504 = vmatpush1.bf16.msra.mxu0 %v2369
    %2505 = vmatprep.subr.bf16.mxu0 %v2373
    %2506 = vmatpush1.bf16.msra.mxu0 %v2372
    %2507 = vmatprep.subr.bf16.mxu0 %v2376
    %2508 = vmatpush1.bf16.msra.mxu0 %v2375
    %2509 = vmatprep.subr.bf16.mxu0 0
    %2510 = vmatpush1.bf16.msra.mxu0 0
    %2511 = vmatprep.subr.bf16.mxu0 0
    %2512 = vmatpush1.bf16.msra.mxu0 0
    %2513 = vmatprep.subr.bf16.mxu0 0
    %2514 = vmatpush1.bf16.msra.mxu0 0
    %2515 = vmatprep.subr.bf16.mxu0 0
    %2516 = vmatpush1.bf16.msra.mxu0 0
    %2517 = vmatprep.subr.bf16.mxu0 0
    %2518 = vmatpush1.bf16.msra.mxu0 0
    %2519 = vmatprep.subr.bf16.mxu0 0
    %2520 = vmatpush1.bf16.msra.mxu0 0
    %2521 = vmatprep.subr.bf16.mxu0 0
    %2522 = vmatpush1.bf16.msra.mxu0 0
    %2523 = vmatprep.subr.bf16.mxu0 0
    %2524 = vmatpush1.bf16.msra.mxu0 0
    %2525 = vmatprep.mubr.bf16.mxu0 0
    %2526 = vmatmul.mubr.bf16.gmra.mrb[0].mxu0 %v1953
    %v2527 = vpop.f32.mrb[0].mxu0
    %v2528 = vadd.f32 %v2485, %v2527
    %v2529 = vpop.f32.mrb[0].mxu0
    %v2530 = vadd.f32 %v2487, %v2529
    %v2531 = vpop.f32.mrb[0].mxu0
    %v2532 = vadd.f32 %v2489, %v2531
    %v2533 = vpop.f32.mrb[0].mxu0
    %v2534 = vadd.f32 %v2491, %v2533
    %2535 = vdwg.mxu0
    %2536 = vmatprep.subr.bf16.mxu0 0
    %2537 = vmatpush1.bf16.msra.mxu0 %v2308
    %2538 = vmatprep.subr.bf16.mxu0 0
    %2539 = vmatpush1.bf16.msra.mxu0 %v2311
    %2540 = vmatprep.subr.bf16.mxu0 0
    %2541 = vmatpush1.bf16.msra.mxu0 %v2314
    %2542 = vmatprep.subr.bf16.mxu0 0
    %2543 = vmatpush1.bf16.msra.mxu0 %v2317
    %2544 = vmatprep.subr.bf16.mxu0 0
    %2545 = vmatpush1.bf16.msra.mxu0 %v2320
    %2546 = vmatprep.subr.bf16.mxu0 0
    %2547 = vmatpush1.bf16.msra.mxu0 %v2323
    %2548 = vmatprep.subr.bf16.mxu0 0
    %2549 = vmatpush1.bf16.msra.mxu0 %v2326
    %2550 = vmatprep.subr.bf16.mxu0 0
    %2551 = vmatpush1.bf16.msra.mxu0 %v2329
    %2552 = vmatprep.subr.bf16.mxu0 0
    %2553 = vmatpush1.bf16.msra.mxu0 %v2332
    %2554 = vmatprep.subr.bf16.mxu0 0
    %2555 = vmatpush1.bf16.msra.mxu0 %v2335
    %2556 = vmatprep.subr.bf16.mxu0 0
    %2557 = vmatpush1.bf16.msra.mxu0 %v2338
    %2558 = vmatprep.subr.bf16.mxu0 0
    %2559 = vmatpush1.bf16.msra.mxu0 %v2341
    %2560 = vmatprep.subr.bf16.mxu0 0
    %2561 = vmatpush1.bf16.msra.mxu0 %v2344
    %2562 = vmatprep.subr.bf16.mxu0 0
    %2563 = vmatpush1.bf16.msra.mxu0 %v2347
    %2564 = vmatprep.subr.bf16.mxu0 0
    %2565 = vmatpush1.bf16.msra.mxu0 %v2350
    %2566 = vmatprep.subr.bf16.mxu0 0
    %2567 = vmatpush1.bf16.msra.mxu0 %v2353
    %2568 = vmatprep.mubr.bf16.mxu0 %v1952
    %2569 = vmatmul.mubr.bf16.gmra.mrb[0].mxu0 %v1951
    %v2570 = vpop.f32.mrb[0].mxu0
    %v2571 = vadd.f32 %v2062, %v2570
    %v2572 = vpop.f32.mrb[0].mxu0
    %v2573 = vpop.f32.mrb[0].mxu0
    %v2574 = vadd.f32 %v2062, %v2573
    %v2575 = vpop.f32.mrb[0].mxu0
    %2576 = vdwg.mxu0
    %2577 = vmatprep.subr.bf16.mxu0 0
    %2578 = vmatpush1.bf16.msra.mxu0 %v2356
    %2579 = vmatprep.subr.bf16.mxu0 0
    %2580 = vmatpush1.bf16.msra.mxu0 %v2359
    %2581 = vmatprep.subr.bf16.mxu0 0
    %2582 = vmatpush1.bf16.msra.mxu0 %v2362
    %2583 = vmatprep.subr.bf16.mxu0 0
    %2584 = vmatpush1.bf16.msra.mxu0 %v2365
    %2585 = vmatprep.subr.bf16.mxu0 0
    %2586 = vmatpush1.bf16.msra.mxu0 %v2368
    %2587 = vmatprep.subr.bf16.mxu0 0
    %2588 = vmatpush1.bf16.msra.mxu0 %v2371
    %2589 = vmatprep.subr.bf16.mxu0 0
    %2590 = vmatpush1.bf16.msra.mxu0 %v2374
    %2591 = vmatprep.subr.bf16.mxu0 0
    %2592 = vmatpush1.bf16.msra.mxu0 %v2377
    %2593 = vmatprep.subr.bf16.mxu0 0
    %2594 = vmatpush1.bf16.msra.mxu0 0
    %2595 = vmatprep.subr.bf16.mxu0 0
    %2596 = vmatpush1.bf16.msra.mxu0 0
    %2597 = vmatprep.subr.bf16.mxu0 0
    %2598 = vmatpush1.bf16.msra.mxu0 0
    %2599 = vmatprep.subr.bf16.mxu0 0
    %2600 = vmatpush1.bf16.msra.mxu0 0
    %2601 = vmatprep.subr.bf16.mxu0 0
    %2602 = vmatpush1.bf16.msra.mxu0 0
    %2603 = vmatprep.subr.bf16.mxu0 0
    %2604 = vmatpush1.bf16.msra.mxu0 0
    %2605 = vmatprep.subr.bf16.mxu0 0
    %2606 = vmatpush1.bf16.msra.mxu0 0
    %2607 = vmatprep.subr.bf16.mxu0 0
    %2608 = vmatpush1.bf16.msra.mxu0 0
    %2609 = vmatprep.mubr.bf16.mxu0 0
    %2610 = vmatmul.mubr.bf16.gmra.mrb[0].mxu0 %v1953
    %v2611 = vpop.f32.mrb[0].mxu0
    %v2612 = vadd.f32 %v2571, %v2611
    %v2613 = vpop.f32.mrb[0].mxu0
    %v2614 = vpop.f32.mrb[0].mxu0
    %v2615 = vadd.f32 %v2574, %v2614
    %v2616 = vpop.f32.mrb[0].mxu0
    %2617 = vdwg.mxu0
    %v2618 = vmax.f32 %v2528, 0.0
    %v2619 = vmax.f32 %v2530, 0.0
    %v2620 = vmax.f32 %v2612, 0.0
    %v2621 = vmax.f32 %v2532, 0.0
    %v2622 = vmax.f32 %v2534, 0.0
    %v2623 = vmax.f32 %v2615, 0.0
    %v2624 = vpack.c.bf16 %v2621, %v2618
    %v2625 = vpack.c.bf16 %v2622, %v2619
    %v2626 = vpack.c.bf16 %v2623, %v2620
    %v2627 = vld [vmem:[%s7] sm:$0xf]
    %v2628 = vld [vmem:[%s7 + $0x4] sm:$0xf]
    %v2629 = vld [vmem:[%s7 + $0x8] sm:$0xf]
    %v2630 = vld [vmem:[%s7 + $0xc] sm:$0xf]
    %v2631 = vld [vmem:[%s7 + $0x10] sm:$0xf]
    %v2632 = vld [vmem:[%s7 + $0x14] sm:$0xf]
    %v2633 = vld [vmem:[%s7 + $0x18] sm:$0xf]
    %v2634 = vld [vmem:[%s7 + $0x1c] sm:$0xf]
    %v2635 = vld [vmem:[%s7 + $0x20] sm:$0xf]
    %v2636 = vld [vmem:[%s7 + $0x24] sm:$0xf]
    %v2637 = vld [vmem:[%s7 + $0x28] sm:$0xf]
    %v2638 = vld [vmem:[%s7 + $0x2c] sm:$0xf]
    %v2639 = vld [vmem:[%s7 + $0x30] sm:$0xf]
    %v2640 = vld [vmem:[%s7 + $0x34] sm:$0xf]
    %v2641 = vld [vmem:[%s7 + $0x38] sm:$0xf]
    %v2642 = vld [vmem:[%s7 + $0x3c] sm:$0xf]
    %v2643 = vld [vmem:[%s7 + $0x40] sm:$0xf]
    %v2644 = vld [vmem:[%s7 + $0x44] sm:$0xf]
    %v2645 = vld [vmem:[%s7 + $0x48] sm:$0xf]
    %v2646 = vld [vmem:[%s7 + $0x4c] sm:$0xf]
    %v2647 = vld [vmem:[%s7 + $0x50] sm:$0xf]
    %v2648 = vld [vmem:[%s7 + $0x54] sm:$0xf]
    %v2649 = vld [vmem:[%s7 + $0x58] sm:$0xf]
    %v2650 = vld [vmem:[%s7 + $0x5c] sm:$0xf]
    %v2651 = vld [vmem:[%s7 + $0x60] sm:$0xf]
    %v2652 = vld [vmem:[%s7 + $0x64] sm:$0xf]
    %v2653 = vld [vmem:[%s7 + $0x68] sm:$0xf]
    %v2654 = vld [vmem:[%s7 + $0x6c] sm:$0xf]
    %v2655 = vld [vmem:[%s7 + $0x70] sm:$0xf]
    %v2656 = vld [vmem:[%s7 + $0x74] sm:$0xf]
    %v2657 = vld [vmem:[%s7 + $0x78] sm:$0xf]
    %v2658 = vld [vmem:[%s7 + $0x7c] sm:$0xf]
    %v2659 = vld [vmem:[%s7 + $0x80] sm:$0xf]
    %v2660 = vld [vmem:[%s7 + $0x84] sm:$0xf]
    %v2661 = vld [vmem:[%s7 + $0x88] sm:$0xf]
    %v2662 = vld [vmem:[%s7 + $0x8c] sm:$0xf]
    %v2663 = vld [vmem:[%s7 + $0x90] sm:$0xf]
    %v2664 = vld [vmem:[%s7 + $0x94] sm:$0xf]
    %v2665 = vld [vmem:[%s7 + $0x98] sm:$0xf]
    %v2666 = vld [vmem:[%s7 + $0x9c] sm:$0xf]
    %v2667 = vld [vmem:[%s7 + $0xa0] sm:$0xf]
    %v2668 = vld [vmem:[%s7 + $0xa4] sm:$0xf]
    %v2669 = vld [vmem:[%s7 + $0xa8] sm:$0xf]
    %v2670 = vld [vmem:[%s7 + $0xac] sm:$0xf]
    %v2671 = vld [vmem:[%s7 + $0xb0] sm:$0xf]
    %v2672 = vld [vmem:[%s7 + $0xb4] sm:$0xf]
    %v2673 = vld [vmem:[%s7 + $0xb8] sm:$0xf]
    %v2674 = vld [vmem:[%s7 + $0xbc] sm:$0xf]
    %v2676 = vlaneseq
    %v2677 = vshrl.u32 %v2676, 7
    %v2678 = vsub.s32 0, %v2677
    %v2679 = vrot.slane %v126, %v2678
    %v2729 = vunpack.c.l.b16 %v2627
    %v2730 = vunpack.c.l.b16 %v2628
    %v2731 = vunpack.c.l.b16 %v2629
    %v2732 = vunpack.c.l.b16 %v2630
    %v2733 = vunpack.c.l.b16 %v2631
    %v2734 = vunpack.c.l.b16 %v2632
    %v2735 = vunpack.c.l.b16 %v2633
    %v2736 = vunpack.c.l.b16 %v2634
    %v2737 = vunpack.c.l.b16 %v2635
    %v2738 = vunpack.c.l.b16 %v2636
    %v2739 = vunpack.c.l.b16 %v2637
    %v2740 = vunpack.c.l.b16 %v2638
    %v2741 = vunpack.c.l.b16 %v2639
    %v2742 = vunpack.c.l.b16 %v2640
    %v2743 = vunpack.c.l.b16 %v2641
    %v2744 = vunpack.c.l.b16 %v2642
    %v2745 = vunpack.c.l.b16 %v2643
    %v2746 = vunpack.c.l.b16 %v2644
    %v2747 = vunpack.c.l.b16 %v2645
    %v2748 = vunpack.c.l.b16 %v2646
    %v2749 = vunpack.c.l.b16 %v2647
    %v2750 = vunpack.c.l.b16 %v2648
    %v2751 = vunpack.c.l.b16 %v2649
    %v2752 = vunpack.c.l.b16 %v2650
    %v2753 = vunpack.c.l.b16 %v2651
    %v2754 = vunpack.c.l.b16 %v2652
    %v2755 = vunpack.c.l.b16 %v2653
    %v2756 = vunpack.c.l.b16 %v2654
    %v2757 = vunpack.c.l.b16 %v2655
    %v2758 = vunpack.c.l.b16 %v2656
    %v2759 = vunpack.c.l.b16 %v2657
    %v2760 = vunpack.c.l.b16 %v2658
    %v2761 = vunpack.c.l.b16 %v2659
    %v2762 = vunpack.c.l.b16 %v2660
    %v2763 = vunpack.c.l.b16 %v2661
    %v2764 = vunpack.c.l.b16 %v2662
    %v2765 = vunpack.c.l.b16 %v2663
    %v2766 = vunpack.c.l.b16 %v2664
    %v2767 = vunpack.c.l.b16 %v2665
    %v2768 = vunpack.c.l.b16 %v2666
    %v2769 = vunpack.c.l.b16 %v2667
    %v2770 = vunpack.c.l.b16 %v2668
    %v2771 = vunpack.c.l.b16 %v2669
    %v2772 = vunpack.c.l.b16 %v2670
    %v2773 = vunpack.c.l.b16 %v2671
    %v2774 = vunpack.c.l.b16 %v2672
    %v2775 = vunpack.c.l.b16 %v2673
    %v2776 = vunpack.c.l.b16 %v2674
    %v2777 = vpack.c.b16 %v2730, %v2729
    %v2778 = vpack.c.b16 %v2732, %v2731
    %v2779 = vpack.c.b16 %v2734, %v2733
    %v2780 = vpack.c.b16 %v2736, %v2735
    %v2781 = vpack.c.b16 %v2738, %v2737
    %v2782 = vpack.c.b16 %v2740, %v2739
    %v2783 = vpack.c.b16 %v2742, %v2741
    %v2784 = vpack.c.b16 %v2744, %v2743
    %v2785 = vpack.c.b16 %v2746, %v2745
    %v2786 = vpack.c.b16 %v2748, %v2747
    %v2787 = vpack.c.b16 %v2750, %v2749
    %v2788 = vpack.c.b16 %v2752, %v2751
    %v2789 = vpack.c.b16 %v2754, %v2753
    %v2790 = vpack.c.b16 %v2756, %v2755
    %v2791 = vpack.c.b16 %v2758, %v2757
    %v2792 = vpack.c.b16 %v2760, %v2759
    %v2793 = vpack.c.b16 %v2762, %v2761
    %v2794 = vpack.c.b16 %v2764, %v2763
    %v2795 = vpack.c.b16 %v2766, %v2765
    %v2796 = vpack.c.b16 %v2768, %v2767
    %v2797 = vpack.c.b16 %v2770, %v2769
    %v2798 = vpack.c.b16 %v2772, %v2771
    %v2799 = vpack.c.b16 %v2774, %v2773
    %v2800 = vpack.c.b16 %v2776, %v2775
    %2825 = vmatprep.subr.bf16.mxu0 0
    %2826 = vmatpush1.bf16.msra.mxu0 %v2777
    %2827 = vmatprep.subr.bf16.mxu0 0
    %2828 = vmatpush1.bf16.msra.mxu0 %v2778
    %2829 = vmatprep.subr.bf16.mxu0 0
    %2830 = vmatpush1.bf16.msra.mxu0 %v2779
    %2831 = vmatprep.subr.bf16.mxu0 0
    %2832 = vmatpush1.bf16.msra.mxu0 %v2780
    %2833 = vmatprep.subr.bf16.mxu0 0
    %2834 = vmatpush1.bf16.msra.mxu0 %v2781
    %2835 = vmatprep.subr.bf16.mxu0 0
    %2836 = vmatpush1.bf16.msra.mxu0 %v2782
    %2837 = vmatprep.subr.bf16.mxu0 0
    %2838 = vmatpush1.bf16.msra.mxu0 %v2783
    %2839 = vmatprep.subr.bf16.mxu0 0
    %2840 = vmatpush1.bf16.msra.mxu0 %v2784
    %2841 = vmatprep.subr.bf16.mxu0 0
    %2842 = vmatpush1.bf16.msra.mxu0 %v2785
    %2843 = vmatprep.subr.bf16.mxu0 0
    %2844 = vmatpush1.bf16.msra.mxu0 %v2786
    %2845 = vmatprep.subr.bf16.mxu0 0
    %2846 = vmatpush1.bf16.msra.mxu0 %v2787
    %2847 = vmatprep.subr.bf16.mxu0 0
    %2848 = vmatpush1.bf16.msra.mxu0 %v2788
    %2849 = vmatprep.subr.bf16.mxu0 0
    %2850 = vmatpush1.bf16.msra.mxu0 %v2789
    %2851 = vmatprep.subr.bf16.mxu0 0
    %2852 = vmatpush1.bf16.msra.mxu0 %v2790
    %2853 = vmatprep.subr.bf16.mxu0 0
    %2854 = vmatpush1.bf16.msra.mxu0 %v2791
    %2855 = vmatprep.subr.bf16.mxu0 0
    %2856 = vmatpush1.bf16.msra.mxu0 %v2792
    %2857 = vmatprep.mubr.bf16.mxu0 %v2625
    %2858 = vmatmul.mubr.bf16.gmra.mrb[0].mxu0 %v2624
    %v2859 = vpop.f32.mrb[0].mxu0
    %v2860 = vadd.f32 %v2679, %v2859
    %v2861 = vpop.f32.mrb[0].mxu0
    %v2862 = vpop.f32.mrb[0].mxu0
    %v2863 = vadd.f32 %v2679, %v2862
    %v2864 = vpop.f32.mrb[0].mxu0
    %2865 = vdwg.mxu0
    %2866 = vmatprep.subr.bf16.mxu0 0
    %2867 = vmatpush1.bf16.msra.mxu0 %v2793
    %2868 = vmatprep.subr.bf16.mxu0 0
    %2869 = vmatpush1.bf16.msra.mxu0 %v2794
    %2870 = vmatprep.subr.bf16.mxu0 0
    %2871 = vmatpush1.bf16.msra.mxu0 %v2795
    %2872 = vmatprep.subr.bf16.mxu0 0
    %2873 = vmatpush1.bf16.msra.mxu0 %v2796
    %2874 = vmatprep.subr.bf16.mxu0 0
    %2875 = vmatpush1.bf16.msra.mxu0 %v2797
    %2876 = vmatprep.subr.bf16.mxu0 0
    %2877 = vmatpush1.bf16.msra.mxu0 %v2798
    %2878 = vmatprep.subr.bf16.mxu0 0
    %2879 = vmatpush1.bf16.msra.mxu0 %v2799
    %2880 = vmatprep.subr.bf16.mxu0 0
    %2881 = vmatpush1.bf16.msra.mxu0 %v2800
    %2882 = vmatprep.subr.bf16.mxu0 0
    %2883 = vmatpush1.bf16.msra.mxu0 0
    %2884 = vmatprep.subr.bf16.mxu0 0
    %2885 = vmatpush1.bf16.msra.mxu0 0
    %2886 = vmatprep.subr.bf16.mxu0 0
    %2887 = vmatpush1.bf16.msra.mxu0 0
    %2888 = vmatprep.subr.bf16.mxu0 0
    %2889 = vmatpush1.bf16.msra.mxu0 0
    %2890 = vmatprep.subr.bf16.mxu0 0
    %2891 = vmatpush1.bf16.msra.mxu0 0
    %2892 = vmatprep.subr.bf16.mxu0 0
    %2893 = vmatpush1.bf16.msra.mxu0 0
    %2894 = vmatprep.subr.bf16.mxu0 0
    %2895 = vmatpush1.bf16.msra.mxu0 0
    %2896 = vmatprep.subr.bf16.mxu0 0
    %2897 = vmatpush1.bf16.msra.mxu0 0
    %2898 = vmatprep.mubr.bf16.mxu0 0
    %2899 = vmatmul.mubr.bf16.gmra.mrb[0].mxu0 %v2626
    %v2900 = vpop.f32.mrb[0].mxu0
    %v2901 = vadd.f32 %v2860, %v2900
    %v2902 = vpop.f32.mrb[0].mxu0
    %v2903 = vpop.f32.mrb[0].mxu0
    %v2904 = vadd.f32 %v2863, %v2903
    %v2905 = vpop.f32.mrb[0].mxu0
    %2906 = vdwg.mxu0
    %v2907 = vpack.c.bf16 %v2904, %v2901
    %v2909 = vunpack.c.l.b16 %v2907
    %v2910 = vunpack.c.h.b16 %v2907
    %v2911 = vpack.c.b16 %v2909, %v2909
    %v2912 = vpack.c.b16 %v2910, %v2910
    %2915 = vst [vmem:[%s9] sm:$0xf] %v2911
    %2916 = vst [vmem:[%s9 + $0x4] sm:$0xf] %v2912
    // Predicated region
    $region50: #{mm_cate_head.1} parent=1 // pred_check
      _
    $region51: #{mm_cate_head.1} parent=1 // pred_check_branch
      %2918 = sbr.rel (0) target = $region53
    $region52: #{mm_cate_head.1} parent=1 // pred_region
      _
    $region53: #{mm_cate_head.1} parent=1 // pred_fallthru
      _
    // Predicated region
    $region54: #{mm_cate_head.1} parent=1 // pred_check
      _
    $region55: #{mm_cate_head.1} parent=1 // pred_check_branch
      %2920 = sbr.rel (0) target = $region57
    $region56: #{mm_cate_head.1} parent=1 // pred_region
      _
    $region57: #{mm_cate_head.1} parent=1 // pred_fallthru
      _
    %2921 = vsyncpa [#allocation3], 1
    %2922 = vsyncpa [#allocation5], 1

</llo_original>
